<compile_context>
chip_gen: v7x
topology: tpu7x:2x2x1
jax: 0.10.0
libtpu: 0.0.40
codegen_flags: <defaults>
</compile_context>

<pallas_src>
import functools
import math

import numpy as np
import jax
import jax.numpy as jnp
from jax import lax
from jax.experimental import pallas as pl
from jax.experimental.pallas import tpu as pltpu


# ----------------------------- segment planning ----------------------------
def _calculate_step(num_nodes: int, par_length: int, seq_len: int) -> int:
    if num_nodes == 1:
        return 1
    if seq_len <= par_length:
        return 1
    return max(1, int(math.floor((seq_len - par_length) / (num_nodes - 1))))


def _segments(num_nodes: int, par_length: int, seq_len: int):
    """Static (node_idx, start, length) overlap-add plan (mirrors the torch loop)."""
    step = _calculate_step(num_nodes, par_length, seq_len)
    segs = []
    for i in range(num_nodes):
        start = min(i * step, seq_len)
        end = min(i * step + par_length, seq_len)
        if end - start > 0:
            segs.append((i, start, end - start))
    return segs


def _round_up(v: int, m: int) -> int:
    return (v + m - 1) // m * m


def _cdiv(a: int, b: int) -> int:
    return -(-a // b)


def _vmem_capacity_bytes() -> int:
    try:
        return int(pltpu.get_tpu_info().vmem_capacity_bytes)
    except Exception:
        return 64 * 1024 * 1024          # conservative default (v7x per-TC VMEM)


# ------------------------------ block planning ------------------------------
def _plan_blocks(B, L, NP, D, x_itemsize, s_itemsize, out_itemsize, budget_bytes):
    """Pick (bb, tk, tl) so the double-buffered VMEM footprint fits the budget."""
    lane = lambda v: _round_up(v, 128)
    sub = lambda v: _round_up(v, 8)

    def footprint(bb, tk, tl):
        bbD = bb * D
        x_b = 2 * sub(tk) * lane(bbD) * x_itemsize        # x tile (double-buffered)
        s_b = 2 * sub(tl) * lane(tk) * s_itemsize         # scatter-matrix tile
        o_b = 2 * sub(tl) * lane(bbD) * out_itemsize      # output tile
        a_b = sub(tl) * lane(bbD) * 4                     # f32 accumulator scratch
        p_b = 2 * 2 * 8 * lane(bbD) * 4                   # gamma / beta
        g_b = 2 * 2 * sub(bbD) * lane(bb) * 4             # group-sum / broadcast mats
        return x_b + s_b + o_b + a_b + p_b + g_b

    def try_config(bb, tk):
        if footprint(bb, tk, 8) > budget_bytes:
            return None
        tl = min(_round_up(L, 8), 1024)
        while tl > 8 and footprint(bb, tk, tl) > budget_bytes:
            tl -= 8
        # Shrink tl to minimize padding of the ragged last tile.
        tl = _round_up(_cdiv(L, _cdiv(L, tl)), 8)
        return bb, tk, tl, footprint(bb, tk, tl)

    bb_cands = [d for d in range(min(B, 8), 0, -1)
                if B % d == 0 and (d == 1 or d * D <= 512)]

    # Pass 1: keep the full contraction axis (x slab resident across L tiles,
    # read from HBM exactly once per batch block).
    for bb in bb_cands:
        cfg = try_config(bb, NP)
        if cfg is not None:
            return cfg

    # Pass 2: tile the contraction (N*P) axis so the per-step VMEM stays
    # bounded (large num_nodes*par_length, esp. on v7x's 64 MiB VMEM).
    for bb in bb_cands:
        for tk in (2048, 1024, 512, 256, 128):
            if tk >= NP:
                continue
            cfg = try_config(bb, tk)
            if cfg is not None:
                return cfg

    # Minimal fallback (vmem_limit is raised accordingly in the wrapper).
    tk = NP if NP <= 128 else 128
    return 1, tk, 8, footprint(1, tk, 8)


# --------------------------------- kernel -----------------------------------
def _fusion_kernel(x_ref, s_ref, gamma_ref, beta_ref, gsum_ref, gbc_ref,
                   out_ref, acc_ref, *, eps, inv_d, bb):
    # x_ref:     (1, tk, bb*D)  bb batch elements packed along lanes
    # s_ref:     (tl, tk)       scatter-matrix tile, 1/count folded in
    # gamma_ref: (1, bb*D) f32, beta_ref: (1, bb*D) f32  (tiled bb times)
    # gsum_ref:  (bb*D, bb) f32 0/1 segmented-sum matrix
    # gbc_ref:   (bb, bb*D) f32 its transpose (group broadcast)
    # out_ref:   (1, tl, bb*D)
    # acc_ref:   (tl, bb*D) f32 contraction accumulator (scratch)
    k = pl.program_id(2)

    @pl.when(k == 0)
    def _():
        acc_ref[...] = jnp.zeros_like(acc_ref)

    # Overlap-add + count-normalize for this K slice: one MXU matmul.
    # Operands go to the MXU in their storage dtype (bf16 stays bf16); f32 acc.
    acc_ref[...] += jnp.dot(s_ref[...], x_ref[0],
                            preferred_element_type=jnp.float32)

    @pl.when(k == pl.num_programs(2) - 1)
    def _():
        fused = acc_ref[...]                                     # (tl, bb*D) f32
        gamma = gamma_ref[...]
        beta = beta_ref[...]
        if bb == 1:
            # Single batch element per step: plain lane reduction.
            mean = jnp.sum(fused, axis=-1, keepdims=True) * inv_d
            cent = fused - mean
            var = jnp.sum(cent * cent, axis=-1, keepdims=True) * inv_d
            rstd_b = lax.rsqrt(var + eps)
        else:
            # Segmented (per D-lane group) two-pass LayerNorm via tiny matmuls.
            hi = lax.Precision.HIGHEST
            gsum = gsum_ref[...]                                 # (bb*D, bb)
            gbc = gbc_ref[...]                                   # (bb, bb*D)
            mean = jnp.dot(fused, gsum, precision=hi,
                           preferred_element_type=jnp.float32) * inv_d      # (tl, bb)
            cent = fused - jnp.dot(mean, gbc, precision=hi,
                                   preferred_element_type=jnp.float32)      # (tl, bb*D)
            var = jnp.dot(cent * cent, gsum, precision=hi,
                          preferred_element_type=jnp.float32) * inv_d       # (tl, bb)
            rstd_b = jnp.dot(lax.rsqrt(var + eps), gbc, precision=hi,
                             preferred_element_type=jnp.float32)            # (tl, bb*D)
        out_ref[0] = (cent * rstd_b * gamma + beta).astype(out_ref.dtype)


# -------------------------------- wrapper ------------------------------------
def fusion_forward(x, seq_len, gamma, beta, *, num_nodes, par_length, eps=1e-5):
    B, N, P, D = x.shape
    if N != num_nodes:
        raise ValueError(f"Input num_nodes ({N}) != module num_nodes ({num_nodes})")
    if P != par_length:
        raise ValueError(f"Input node_seq_len ({P}) != module par_length ({par_length})")
    L = int(seq_len)
    if L == 0:
        return jnp.zeros((B, 0, D), x.dtype)

    out_dtype = x.dtype
    # MXU operand dtype: keep bf16 as bf16 (2x MXU throughput, half the S
    # HBM/VMEM traffic); everything else computes in f32. LN math is f32.
    compute_dtype = jnp.bfloat16 if x.dtype == jnp.bfloat16 else jnp.float32
    x = x.astype(compute_dtype)
    itemsize = jnp.dtype(compute_dtype).itemsize

    NP = N * P
    cap = _vmem_capacity_bytes()
    budget = min(max(int(cap * 0.35), 12 * 1024 * 1024), 56 * 1024 * 1024)
    bb, tk, tl, fp = _plan_blocks(B, L, NP, D, itemsize, itemsize,
                                  jnp.dtype(out_dtype).itemsize, budget)
    bbD = bb * D
    n_b = B // bb
    n_l = _cdiv(L, tl)
    L_pad = n_l * tl
    n_k = _cdiv(NP, tk)
    NP_pad = n_k * tk

    # ---- host-side static scatter matrix with 1/count folded in -------------
    segs = _segments(num_nodes, par_length, L)
    counts = np.zeros((L,), np.float64)
    for _, s, ln in segs:
        counts[s:s + ln] += 1.0
    inv_counts = (1.0 / np.maximum(counts, 1e-8)).astype(np.float32)
    S_np = np.zeros((L_pad, NP_pad), np.float32)   # padded rows/cols stay 0
    for i, s, ln in segs:
        r = np.arange(ln)
        S_np[s + r, i * par_length + r] = inv_counts[s + r]
    S = jnp.asarray(S_np, compute_dtype)

    # ---- pack bb batch elements into the matmul lane dimension --------------
    # (wrapper-side layout plumbing so the kernel sees one lane-dense slab)
    x_r = x.reshape(n_b, bb, NP, D).transpose(0, 2, 1, 3).reshape(n_b, NP, bbD)
    if NP_pad != NP:
        x_r = jnp.pad(x_r, ((0, 0), (0, NP_pad - NP), (0, 0)))

    gamma_t = jnp.tile(jnp.asarray(gamma, jnp.float32).reshape(1, D), (1, bb))
    beta_t = jnp.tile(jnp.asarray(beta, jnp.float32).reshape(1, D), (1, bb))

    # 0/1 matrices for segmented (per batch-group) LayerNorm sums / broadcasts.
    G_np = np.zeros((bbD, bb), np.float32)
    for g in range(bb):
        G_np[g * D:(g + 1) * D, g] = 1.0
    G = jnp.asarray(G_np)
    GT = jnp.asarray(np.ascontiguousarray(G_np.T))

    kernel = functools.partial(_fusion_kernel, eps=float(eps), inv_d=1.0 / D, bb=bb)
    vmem_limit = int(min(max(2 * fp + (2 << 20), 16 * 1024 * 1024),
                         int(cap * 0.75)))
    # On multi-core parts prefer sharding the batch axis (avoid duplicating the
    # resident x slab across cores); with a single batch block allow l-sharding.
    l_sem = "arbitrary" if n_b >= 2 else "parallel"

    out = pl.pallas_call(
        kernel,
        out_shape=jax.ShapeDtypeStruct((n_b, L_pad, bbD), out_dtype),
        grid_spec=pltpu.PrefetchScalarGridSpec(
            num_scalar_prefetch=0,
            grid=(n_b, n_l, n_k),
            in_specs=[
                pl.BlockSpec((1, tk, bbD), lambda b, l, k: (b, k, 0)),   # x slab
                pl.BlockSpec((tl, tk), lambda b, l, k: (l, k)),          # scatter tile
                pl.BlockSpec((1, bbD), lambda b, l, k: (0, 0)),          # gamma
                pl.BlockSpec((1, bbD), lambda b, l, k: (0, 0)),          # beta
                pl.BlockSpec((bbD, bb), lambda b, l, k: (0, 0)),         # group-sum mat
                pl.BlockSpec((bb, bbD), lambda b, l, k: (0, 0)),         # group-bcast mat
            ],
            out_specs=pl.BlockSpec((1, tl, bbD), lambda b, l, k: (b, l, 0)),
            scratch_shapes=[pltpu.VMEM((tl, bbD), jnp.float32)],
        ),
        compiler_params=pltpu.CompilerParams(
            dimension_semantics=("parallel", l_sem, "arbitrary"),
            vmem_limit_bytes=vmem_limit,
        ),
    )(x_r, S, gamma_t, beta_t, G, GT)

    # Unpack lanes back to (B, L, D); transpose/slice is wrapper-side plumbing.
    out = out.reshape(n_b, L_pad, bb, D).transpose(0, 2, 1, 3).reshape(B, L_pad, D)
    if L_pad != L:
        out = out[:, :L, :]
    return out
    # TODO(synk): exploit the band structure of S (each L tile is touched by
    # only ~ceil((tl+P)/step) nodes) via scalar-prefetched K-window index_maps
    # to cut the dense contraction's MXU FLOPs and the K-tiled x re-streaming.


# ----------------------------- pure-JAX reference ----------------------------
def fusion_reference(x, seq_len, gamma, beta, *, num_nodes, par_length, eps=1e-5):
    B, N, P, D = x.shape
    L = int(seq_len)
    segs = _segments(num_nodes, par_length, L)
    xn = np.asarray(x, np.float32)
    out = np.zeros((B, L, D), np.float32)
    counts = np.zeros((B, L, 1), np.float32)
    for (i, s, ln) in segs:
        out[:, s:s + ln, :] += xn[:, i, :ln, :]
        counts[:, s:s + ln, :] += 1.0
    counts = np.maximum(counts, 1e-8)
    fused = out / counts
    mean = fused.mean(-1, keepdims=True)
    var = ((fused - mean) ** 2).mean(-1, keepdims=True)
    normed = (fused - mean) / np.sqrt(var + eps)
    return normed * np.asarray(gamma, np.float32) + np.asarray(beta, np.float32)


# ---------------------------------- main --------------------------------------
if __name__ == "__main__":
    num_nodes, par_length, embedding_dim = 3, 8, 32
    batch, seq_len = 2, 20

    key = jax.random.PRNGKey(0)
    kx, kg, kb = jax.random.split(key, 3)
    x = jax.random.normal(kx, (batch, num_nodes, par_length, embedding_dim),
                          dtype=jnp.float32)
    # LayerNorm params (perturbed from torch defaults so the affine step matters).
    gamma = 1.0 + 0.1 * jax.random.normal(kg, (embedding_dim,), dtype=jnp.float32)
    beta = 0.1 * jax.random.normal(kb, (embedding_dim,), dtype=jnp.float32)

    out = fusion_forward(x, seq_len, gamma, beta,
                         num_nodes=num_nodes, par_length=par_length)
    out = jax.block_until_ready(out)

    ref = fusion_reference(x, seq_len, gamma, beta,
                           num_nodes=num_nodes, par_length=par_length)
    np.testing.assert_allclose(np.asarray(out, np.float32), ref, rtol=5e-3, atol=5e-3)

    print("KERNEL_OK")
</pallas_src>

<mosaic_0001>
module attributes {stable_mosaic.version = 11 : i64} {
  func.func @_fusion_kernel(%arg0: i32, %arg1: i32, %arg2: i32, %arg3: memref<1x24x64xf32, #tpu.memory_space<vmem>>, %arg4: memref<24x24xf32, #tpu.memory_space<vmem>>, %arg5: memref<1x64xf32, #tpu.memory_space<vmem>>, %arg6: memref<1x64xf32, #tpu.memory_space<vmem>>, %arg7: memref<64x2xf32, #tpu.memory_space<vmem>>, %arg8: memref<2x64xf32, #tpu.memory_space<vmem>>, %arg9: memref<1x24x64xf32, #tpu.memory_space<vmem>>, %arg10: memref<24x64xf32, #tpu.memory_space<vmem>>) attributes {dimension_semantics = [#tpu.dimension_semantics<parallel>, #tpu.dimension_semantics<parallel>, #tpu.dimension_semantics<arbitrary>], iteration_bounds = array<i64: 1, 1, 1>, scalar_prefetch = 0 : i64, scratch_operands = 1 : i64, tpu.core_type = #tpu.core_type<tc>, window_params = [{transform_indices = @transform_0, window_bounds = array<i64: 1, 24, 64>}, {transform_indices = @transform_1, window_bounds = array<i64: 24, 24>}, {pipeline_mode = #tpu.pipeline_mode<synchronous>, transform_indices = @transform_2, window_bounds = array<i64: 1, 64>}, {pipeline_mode = #tpu.pipeline_mode<synchronous>, transform_indices = @transform_3, window_bounds = array<i64: 1, 64>}, {pipeline_mode = #tpu.pipeline_mode<synchronous>, transform_indices = @transform_4, window_bounds = array<i64: 64, 2>}, {pipeline_mode = #tpu.pipeline_mode<synchronous>, transform_indices = @transform_5, window_bounds = array<i64: 2, 64>}, {transform_indices = @transform_6, window_bounds = array<i64: 1, 24, 64>}]} {
    %c0_i32 = arith.constant 0 : i32
    %0 = arith.cmpi eq, %arg2, %c0_i32 : i32
    %1 = arith.extui %0 : i1 to i32
    %c0_i32_0 = arith.constant 0 : i32
    %2 = arith.cmpi ne, %1, %c0_i32_0 : i32
    scf.if %2 {
      %cst_11 = arith.constant 0.000000e+00 : f32
      %13 = vector.broadcast %cst_11 : f32 to vector<24x64xf32>
      %c0_12 = arith.constant 0 : index
      %c0_13 = arith.constant 0 : index
      %14 = vector.load %arg10[%c0_12, %c0_13] : memref<24x64xf32, #tpu.memory_space<vmem>>, vector<24x64xf32>
      tpu.vector_store %arg10[%c0_12, %c0_13], %13 {strides = array<i32>} : memref<24x64xf32, #tpu.memory_space<vmem>>, vector<24x64xf32>,
    } else {
    }
    %c0 = arith.constant 0 : index
    %c0_1 = arith.constant 0 : index
    %3 = vector.load %arg10[%c0, %c0_1] : memref<24x64xf32, #tpu.memory_space<vmem>>, vector<24x64xf32>
    %c0_2 = arith.constant 0 : index
    %c0_3 = arith.constant 0 : index
    %4 = vector.load %arg4[%c0_2, %c0_3] : memref<24x24xf32, #tpu.memory_space<vmem>>, vector<24x24xf32>
    %c0_4 = arith.constant 0 : index
    %c0_5 = arith.constant 0 : index
    %c0_6 = arith.constant 0 : index
    %5 = vector.load %arg3[%c0_4, %c0_5, %c0_6] : memref<1x24x64xf32, #tpu.memory_space<vmem>>, vector<1x24x64xf32>
    %6 = vector.shape_cast %5 : vector<1x24x64xf32> to vector<24x64xf32>
    %cst = arith.constant dense<0.000000e+00> : vector<24x64xf32>
    %7 = tpu.matmul %4, %6, %cst {dimension_numbers = #tpu.dot_dimension_numbers<[1], [0], [0], [1], [0, 0, 1, 1], [], []>} : vector<24x24xf32>, vector<24x64xf32>, vector<24x64xf32> -> vector<24x64xf32>
    %8 = arith.addf %3, %7 : vector<24x64xf32>
    %c0_7 = arith.constant 0 : index
    %c0_8 = arith.constant 0 : index
    %9 = vector.load %arg10[%c0_7, %c0_8] : memref<24x64xf32, #tpu.memory_space<vmem>>, vector<24x64xf32>
    tpu.vector_store %arg10[%c0_7, %c0_8], %8 {strides = array<i32>} : memref<24x64xf32, #tpu.memory_space<vmem>>, vector<24x64xf32>,
    %c0_i32_9 = arith.constant 0 : i32
    %10 = arith.cmpi eq, %arg2, %c0_i32_9 : i32
    %11 = arith.extui %10 : i1 to i32
    %c0_i32_10 = arith.constant 0 : i32
    %12 = arith.cmpi ne, %11, %c0_i32_10 : i32
    scf.if %12 {
      %c0_11 = arith.constant 0 : index
      %c0_12 = arith.constant 0 : index
      %13 = vector.load %arg10[%c0_11, %c0_12] : memref<24x64xf32, #tpu.memory_space<vmem>>, vector<24x64xf32>
      %c0_13 = arith.constant 0 : index
      %c0_14 = arith.constant 0 : index
      %14 = vector.load %arg5[%c0_13, %c0_14] : memref<1x64xf32, #tpu.memory_space<vmem>>, vector<1x64xf32>
      %c0_15 = arith.constant 0 : index
      %c0_16 = arith.constant 0 : index
      %15 = vector.load %arg6[%c0_15, %c0_16] : memref<1x64xf32, #tpu.memory_space<vmem>>, vector<1x64xf32>
      %c0_17 = arith.constant 0 : index
      %c0_18 = arith.constant 0 : index
      %16 = vector.load %arg7[%c0_17, %c0_18] : memref<64x2xf32, #tpu.memory_space<vmem>>, vector<64x2xf32>
      %c0_19 = arith.constant 0 : index
      %c0_20 = arith.constant 0 : index
      %17 = vector.load %arg8[%c0_19, %c0_20] : memref<2x64xf32, #tpu.memory_space<vmem>>, vector<2x64xf32>
      %cst_21 = arith.constant dense<0.000000e+00> : vector<24x2xf32>
      %18 = tpu.matmul %13, %16, %cst_21 {dimension_numbers = #tpu.dot_dimension_numbers<[1], [0], [0], [1], [0, 0, 1, 1], [], []>, precision = #tpu.contract_precision<fp32>} : vector<24x64xf32>, vector<64x2xf32>, vector<24x2xf32> -> vector<24x2xf32>
      %cst_22 = arith.constant 3.125000e-02 : f32
      %19 = vector.broadcast %cst_22 : f32 to vector<24x2xf32>
      %20 = arith.mulf %18, %19 : vector<24x2xf32>
      %cst_23 = arith.constant dense<0.000000e+00> : vector<24x64xf32>
      %21 = tpu.matmul %20, %17, %cst_23 {dimension_numbers = #tpu.dot_dimension_numbers<[1], [0], [0], [1], [0, 0, 1, 1], [], []>, precision = #tpu.contract_precision<fp32>} : vector<24x2xf32>, vector<2x64xf32>, vector<24x64xf32> -> vector<24x64xf32>
      %22 = arith.subf %13, %21 : vector<24x64xf32>
      %23 = arith.mulf %22, %22 : vector<24x64xf32>
      %cst_24 = arith.constant dense<0.000000e+00> : vector<24x2xf32>
      %24 = tpu.matmul %23, %16, %cst_24 {dimension_numbers = #tpu.dot_dimension_numbers<[1], [0], [0], [1], [0, 0, 1, 1], [], []>, precision = #tpu.contract_precision<fp32>} : vector<24x64xf32>, vector<64x2xf32>, vector<24x2xf32> -> vector<24x2xf32>
      %cst_25 = arith.constant 3.125000e-02 : f32
      %25 = vector.broadcast %cst_25 : f32 to vector<24x2xf32>
      %26 = arith.mulf %24, %25 : vector<24x2xf32>
      %cst_26 = arith.constant 9.99999974E-6 : f32
      %27 = vector.broadcast %cst_26 : f32 to vector<24x2xf32>
      %28 = arith.addf %26, %27 : vector<24x2xf32>
      %29 = math.rsqrt %28 : vector<24x2xf32>
      %cst_27 = arith.constant dense<0.000000e+00> : vector<24x64xf32>
      %30 = tpu.matmul %29, %17, %cst_27 {dimension_numbers = #tpu.dot_dimension_numbers<[1], [0], [0], [1], [0, 0, 1, 1], [], []>, precision = #tpu.contract_precision<fp32>} : vector<24x2xf32>, vector<2x64xf32>, vector<24x64xf32> -> vector<24x64xf32>
      %31 = arith.mulf %22, %30 : vector<24x64xf32>
      %32 = vector.broadcast %14 : vector<1x64xf32> to vector<24x64xf32>
      %33 = arith.mulf %31, %32 : vector<24x64xf32>
      %34 = vector.broadcast %15 : vector<1x64xf32> to vector<24x64xf32>
      %35 = arith.addf %33, %34 : vector<24x64xf32>
      %c0_28 = arith.constant 0 : index
      %c0_29 = arith.constant 0 : index
      %c0_30 = arith.constant 0 : index
      %36 = vector.load %arg9[%c0_28, %c0_29, %c0_30] : memref<1x24x64xf32, #tpu.memory_space<vmem>>, vector<1x24x64xf32>
      %37 = vector.shape_cast %36 : vector<1x24x64xf32> to vector<24x64xf32>
      %38 = vector.shape_cast %35 : vector<24x64xf32> to vector<1x24x64xf32>
      tpu.vector_store %arg9[%c0_28, %c0_29, %c0_30], %38 {strides = array<i32>} : memref<1x24x64xf32, #tpu.memory_space<vmem>>, vector<1x24x64xf32>,
    } else {
    }
    return
  }
  func.func @transform_0(%arg0: i32, %arg1: i32, %arg2: i32) -> (i32, i32, i32) {
    %c0_i32 = arith.constant 0 : i32
    %c0_i32_0 = arith.constant 0 : i32
    return %arg0, %arg2, %c0_i32 : i32, i32, i32
  }
  func.func @transform_1(%arg0: i32, %arg1: i32, %arg2: i32) -> (i32, i32) {
    %c0_i32 = arith.constant 0 : i32
    return %arg1, %arg2 : i32, i32
  }
  func.func @transform_2(%arg0: i32, %arg1: i32, %arg2: i32) -> (i32, i32) {
    %c0_i32 = arith.constant 0 : i32
    %c0_i32_0 = arith.constant 0 : i32
    %c0_i32_1 = arith.constant 0 : i32
    return %c0_i32, %c0_i32_0 : i32, i32
  }
  func.func @transform_3(%arg0: i32, %arg1: i32, %arg2: i32) -> (i32, i32) {
    %c0_i32 = arith.constant 0 : i32
    %c0_i32_0 = arith.constant 0 : i32
    %c0_i32_1 = arith.constant 0 : i32
    return %c0_i32, %c0_i32_0 : i32, i32
  }
  func.func @transform_4(%arg0: i32, %arg1: i32, %arg2: i32) -> (i32, i32) {
    %c0_i32 = arith.constant 0 : i32
    %c0_i32_0 = arith.constant 0 : i32
    %c0_i32_1 = arith.constant 0 : i32
    return %c0_i32, %c0_i32_0 : i32, i32
  }
  func.func @transform_5(%arg0: i32, %arg1: i32, %arg2: i32) -> (i32, i32) {
    %c0_i32 = arith.constant 0 : i32
    %c0_i32_0 = arith.constant 0 : i32
    %c0_i32_1 = arith.constant 0 : i32
    return %c0_i32, %c0_i32_0 : i32, i32
  }
  func.func @transform_6(%arg0: i32, %arg1: i32, %arg2: i32) -> (i32, i32, i32) {
    %c0_i32 = arith.constant 0 : i32
    %c0_i32_0 = arith.constant 0 : i32
    return %arg0, %arg1, %c0_i32 : i32, i32, i32
  }
}

</mosaic_0001>

<llo_original>
// kernel: tpu_custom_call.1
$region0: #{tpu_custom_call.1}
  #allocation0 [shape = 'u32[]', space=smem, size = 0x4, offset = 0x4, fixed_abs, tag = 'smem constant byte address 0x4 - core index']
  #allocation1 [shape = 'u32[144,128]{1,0:T(1,128)}', space=vmem, size = 0x12000, scoped, tag = 'internal scratch']
  #allocation2 [shape = 'f32[24,64]{1,0:T(8,128)}', space=vmem, size = 0x3000, scoped, tag = 'scratch operand']
  %s0 = inlined_call_operand.vmem [shape: f32[1,24,64], index: 0, kind: input, shape index: {}]
  %s1 = inlined_call_operand.vmem [shape: f32[24,24], index: 1, kind: input, shape index: {}]
  %s2 = inlined_call_operand.vmem [shape: f32[1,64], index: 2, kind: input, shape index: {}]
  %s3 = inlined_call_operand.vmem [shape: f32[1,64], index: 3, kind: input, shape index: {}]
  %s4 = inlined_call_operand.vmem [shape: f32[64,2], index: 4, kind: input, shape index: {}]
  %s5 = inlined_call_operand.vmem [shape: f32[2,64], index: 5, kind: input, shape index: {}]
  %s6 = inlined_call_operand.hbm [shape: f32[1,24,64], index: 6, kind: output, shape index: {}]
  %s7 = sld [smem:[#allocation0]]
  $region42: #{tpu_custom_call.1} parent=0
    _
  %s9 = ssub.s32 1, %s7
  %s10 = scalar_select 0, %s9, %s7
  $region1: #{tpu_custom_call.1} parent=0
    #allocation3 [shape = 'u8[12288]{0}', space=vmem, size = 0x3000, scoped, tag = 'output window, operand 0, single buffered']
    #allocation4 [shape = 's32[1]{0}', space=sflag, size = 0x4, scoped, tag = 'scoped memory for tpu_custom_call.1']
    %11 = vsyncpa [#allocation4], 0
    // Predicated region
    $region2: #{tpu_custom_call.1} parent=1 // pred_check
      _
    $region3: #{tpu_custom_call.1} parent=1 // pred_check_branch
      %13 = sbr.rel (0) target = $region5
    $region4: #{tpu_custom_call.1} parent=1 // pred_region
      _
    $region5: #{tpu_custom_call.1} parent=1 // pred_fallthru
      _
    // Predicated region
    $region6: #{tpu_custom_call.1} parent=1 // pred_check
      _
    $region7: #{tpu_custom_call.1} parent=1 // pred_check_branch
      %15 = sbr.rel (0) target = $region9
    $region8: #{tpu_custom_call.1} parent=1 // pred_region
      _
    $region9: #{tpu_custom_call.1} parent=1 // pred_fallthru
      _
    // Predicated region
    $region10: #{tpu_custom_call.1} parent=1 // pred_check
      _
    $region11: #{tpu_custom_call.1} parent=1 // pred_check_branch
      %17 = sbr.rel (0) target = $region13
    $region12: #{tpu_custom_call.1} parent=1 // pred_region
      _
    $region13: #{tpu_custom_call.1} parent=1 // pred_fallthru
      _
    // Predicated region
    $region14: #{tpu_custom_call.1} parent=1 // pred_check
      _
    $region15: #{tpu_custom_call.1} parent=1 // pred_check_branch
      %19 = sbr.rel (0) target = $region17
    $region16: #{tpu_custom_call.1} parent=1 // pred_region
      _
    $region17: #{tpu_custom_call.1} parent=1 // pred_fallthru
      _
    // Predicated region
    $region18: #{tpu_custom_call.1} parent=1 // pred_check
      _
    $region19: #{tpu_custom_call.1} parent=1 // pred_check_branch
      %21 = sbr.rel (0) target = $region21
    $region20: #{tpu_custom_call.1} parent=1 // pred_region
      _
    $region21: #{tpu_custom_call.1} parent=1 // pred_fallthru
      _
    // Predicated region
    $region22: #{tpu_custom_call.1} parent=1 // pred_check
      _
    $region23: #{tpu_custom_call.1} parent=1 // pred_check_branch
      %23 = sbr.rel (0) target = $region25
    $region24: #{tpu_custom_call.1} parent=1 // pred_region
      _
    $region25: #{tpu_custom_call.1} parent=1 // pred_fallthru
      _
    %p24 = scmp.eq.s32.totalorder 0, 0
    // Predicated region
    $region26: #{tpu_custom_call.1} parent=1 // pred_check
      %p25 = pneg %p24
    $region27: #{tpu_custom_call.1} parent=1 // pred_check_branch
      %27 = sbr.rel (%p25) target = $region29
    $region28: #{tpu_custom_call.1} parent=1 // pred_region
      %vm28 = vcmask 523264
      %29 = vst.msk [vmem:[#allocation2] sm:$0xff] %vm28, 0.0
      %30 = vst.msk [vmem:[#allocation2 + $0x8] sm:$0xff] %vm28, 0.0
      %31 = vst.msk [vmem:[#allocation2 + $0x10] sm:$0xff] %vm28, 0.0
    $region29: #{tpu_custom_call.1} parent=1 // pred_fallthru
      _
    %v32 = vld [vmem:[#allocation2] sm:$0xff]
    %v33 = vld [vmem:[#allocation2 + $0x8] sm:$0xff]
    %v34 = vld [vmem:[#allocation2 + $0x10] sm:$0xff]
    %v35 = vld [vmem:[%s1] sm:$0xff]
    %v36 = vld [vmem:[%s1 + $0x8] sm:$0xff]
    %v37 = vld [vmem:[%s1 + $0x10] sm:$0xff]
    %v38 = vld [vmem:[%s0] sm:$0xff]
    %v39 = vld [vmem:[%s0 + $0x8] sm:$0xff]
    %v40 = vld [vmem:[%s0 + $0x10] sm:$0xff]
    %vm41 = vcmask 195584
    %v43 = vsel %vm41, %v35, 0
    %v46 = vsel %vm41, %v36, 0
    %v49 = vsel %vm41, %v37, 0
    %51 = vmatprep.subr.mxu0 0.0
    %52 = vmatpush1.msra.mxu0 %v38
    %53 = vmatprep.subr.mxu0 0.0
    %54 = vmatpush1.msra.mxu0 %v39
    %55 = vmatprep.subr.mxu0 0.0
    %56 = vmatpush1.msra.mxu0 %v40
    %57 = vmatprep.subr.mxu0 0.0
    %58 = vmatpush1.msra.mxu0 0.0
    %59 = vmatprep.subr.mxu0 0.0
    %60 = vmatpush1.msra.mxu0 0.0
    %61 = vmatprep.subr.mxu0 0.0
    %62 = vmatpush1.msra.mxu0 0.0
    %63 = vmatprep.subr.mxu0 0.0
    %64 = vmatpush1.msra.mxu0 0.0
    %65 = vmatprep.subr.mxu0 0.0
    %66 = vmatpush1.msra.mxu0 0.0
    %67 = vmatprep.subr.mxu0 0.0
    %68 = vmatpush1.msra.mxu0 0.0
    %69 = vmatprep.subr.mxu0 0.0
    %70 = vmatpush1.msra.mxu0 0.0
    %71 = vmatprep.subr.mxu0 0.0
    %72 = vmatpush1.msra.mxu0 0.0
    %73 = vmatprep.subr.mxu0 0.0
    %74 = vmatpush1.msra.mxu0 0.0
    %75 = vmatprep.subr.mxu0 0.0
    %76 = vmatpush1.msra.mxu0 0.0
    %77 = vmatprep.subr.mxu0 0.0
    %78 = vmatpush1.msra.mxu0 0.0
    %79 = vmatprep.subr.mxu0 0.0
    %80 = vmatpush1.msra.mxu0 0.0
    %81 = vmatprep.subr.mxu0 0.0
    %82 = vmatpush1.msra.mxu0 0.0
    %83 = vmatprep.subr.mxu0 0.0
    %84 = vmatpush1.msra.mxu0 0.0
    %85 = vmatprep.subr.mxu0 0.0
    %86 = vmatpush1.msra.mxu0 0.0
    %87 = vmatprep.subr.mxu0 0.0
    %88 = vmatpush1.msra.mxu0 0.0
    %89 = vmatprep.subr.mxu0 0.0
    %90 = vmatpush1.msra.mxu0 0.0
    %91 = vmatprep.subr.mxu0 0.0
    %92 = vmatpush1.msra.mxu0 0.0
    %93 = vmatprep.subr.mxu0 0.0
    %94 = vmatpush1.msra.mxu0 0.0
    %95 = vmatprep.subr.mxu0 0.0
    %96 = vmatpush1.msra.mxu0 0.0
    %97 = vmatprep.subr.mxu0 0.0
    %98 = vmatpush1.msra.mxu0 0.0
    %99 = vmatprep.subr.mxu0 0.0
    %100 = vmatpush1.msra.mxu0 0.0
    %101 = vmatprep.subr.mxu0 0.0
    %102 = vmatpush1.msra.mxu0 0.0
    %103 = vmatprep.subr.mxu0 0.0
    %104 = vmatpush1.msra.mxu0 0.0
    %105 = vmatprep.subr.mxu0 0.0
    %106 = vmatpush1.msra.mxu0 0.0
    %107 = vmatprep.subr.mxu0 0.0
    %108 = vmatpush1.msra.mxu0 0.0
    %109 = vmatprep.subr.mxu0 0.0
    %110 = vmatpush1.msra.mxu0 0.0
    %111 = vmatprep.subr.mxu0 0.0
    %112 = vmatpush1.msra.mxu0 0.0
    %113 = vmatprep.subr.mxu0 0.0
    %114 = vmatpush1.msra.mxu0 0.0
    %115 = vmatprep.mubr.f32.mxu0 0.0
    %116 = vmatmul.mubr.f32.gmra.mrb[0].mxu0 %v43
    %v117 = vpop.f32.mrb[0].mxu0
    %v118 = vadd.f32 0.0, %v117
    %v119 = vpop.f32.mrb[0].mxu0
    %120 = vmatprep.mubr.f32.mxu0 0.0
    %121 = vmatmul.mubr.f32.gmra.mrb[0].mxu0 %v46
    %v122 = vpop.f32.mrb[0].mxu0
    %v123 = vadd.f32 0.0, %v122
    %v124 = vpop.f32.mrb[0].mxu0
    %125 = vmatprep.mubr.f32.mxu0 0.0
    %126 = vmatmul.mubr.f32.gmra.mrb[0].mxu0 %v49
    %v127 = vpop.f32.mrb[0].mxu0
    %v128 = vadd.f32 0.0, %v127
    %v129 = vpop.f32.mrb[0].mxu0
    %130 = vdwg.mxu0
    %v131 = vadd.f32 %v32, %v118
    %v132 = vadd.f32 %v33, %v123
    %v133 = vadd.f32 %v34, %v128
    %vm134 = vcmask 523264
    %135 = vst.msk [vmem:[#allocation2] sm:$0xff] %vm134, %v131
    %136 = vst.msk [vmem:[#allocation2 + $0x8] sm:$0xff] %vm134, %v132
    %137 = vst.msk [vmem:[#allocation2 + $0x10] sm:$0xff] %vm134, %v133
    // Predicated region
    $region30: #{tpu_custom_call.1} parent=1 // pred_check
      %p138 = pneg %p24
    $region31: #{tpu_custom_call.1} parent=1 // pred_check_branch
      %140 = sbr.rel (%p138) target = $region33
    $region32: #{tpu_custom_call.1} parent=1 // pred_region
      %v141 = vld [vmem:[#allocation2] sm:$0xff]
      %v142 = vld [vmem:[#allocation2 + $0x8] sm:$0xff]
      %v143 = vld [vmem:[#allocation2 + $0x10] sm:$0xff]
      %v144 = vld [vmem:[%s2] sm:$0x1]
      %v145 = vld [vmem:[%s3] sm:$0x1]
      %v146 = vld [vmem:[%s4] sm:$0xff]
      %v147 = vld [vmem:[%s4 + $0x8] sm:$0xff]
      %v148 = vld [vmem:[%s4 + $0x10] sm:$0xff]
      %v149 = vld [vmem:[%s4 + $0x18] sm:$0xff]
      %v150 = vld [vmem:[%s4 + $0x20] sm:$0xff]
      %v151 = vld [vmem:[%s4 + $0x28] sm:$0xff]
      %v152 = vld [vmem:[%s4 + $0x30] sm:$0xff]
      %v153 = vld [vmem:[%s4 + $0x38] sm:$0xff]
      %v154 = vld [vmem:[%s5] sm:$0x3]
      %v156 = vsel %vm134, %v141, 0
      %v159 = vsel %vm134, %v142, 0
      %v162 = vsel %vm134, %v143, 0
      %164 = vmatprep.subr.mxu0 0.0
      %v165 = vand.u32 %v146, 4294901760
      %166 = vmatpush1.msra.mxu0 %v165
      %167 = vmatprep.subr.mxu0 0.0
      %v168 = vand.u32 %v147, 4294901760
      %169 = vmatpush1.msra.mxu0 %v168
      %170 = vmatprep.subr.mxu0 0.0
      %v171 = vand.u32 %v148, 4294901760
      %172 = vmatpush1.msra.mxu0 %v171
      %173 = vmatprep.subr.mxu0 0.0
      %v174 = vand.u32 %v149, 4294901760
      %175 = vmatpush1.msra.mxu0 %v174
      %176 = vmatprep.subr.mxu0 0.0
      %v177 = vand.u32 %v150, 4294901760
      %178 = vmatpush1.msra.mxu0 %v177
      %179 = vmatprep.subr.mxu0 0.0
      %v180 = vand.u32 %v151, 4294901760
      %181 = vmatpush1.msra.mxu0 %v180
      %182 = vmatprep.subr.mxu0 0.0
      %v183 = vand.u32 %v152, 4294901760
      %184 = vmatpush1.msra.mxu0 %v183
      %185 = vmatprep.subr.mxu0 0.0
      %v186 = vand.u32 %v153, 4294901760
      %187 = vmatpush1.msra.mxu0 %v186
      %188 = vmatprep.subr.mxu0 0.0
      %189 = vmatpush1.msra.mxu0 0.0
      %190 = vmatprep.subr.mxu0 0.0
      %191 = vmatpush1.msra.mxu0 0.0
      %192 = vmatprep.subr.mxu0 0.0
      %193 = vmatpush1.msra.mxu0 0.0
      %194 = vmatprep.subr.mxu0 0.0
      %195 = vmatpush1.msra.mxu0 0.0
      %196 = vmatprep.subr.mxu0 0.0
      %197 = vmatpush1.msra.mxu0 0.0
      %198 = vmatprep.subr.mxu0 0.0
      %199 = vmatpush1.msra.mxu0 0.0
      %200 = vmatprep.subr.mxu0 0.0
      %201 = vmatpush1.msra.mxu0 0.0
      %202 = vmatprep.subr.mxu0 0.0
      %203 = vmatpush1.msra.mxu0 0.0
      %204 = vmatprep.subr.mxu0 0.0
      %205 = vmatpush1.msra.mxu0 0.0
      %206 = vmatprep.subr.mxu0 0.0
      %207 = vmatpush1.msra.mxu0 0.0
      %208 = vmatprep.subr.mxu0 0.0
      %209 = vmatpush1.msra.mxu0 0.0
      %210 = vmatprep.subr.mxu0 0.0
      %211 = vmatpush1.msra.mxu0 0.0
      %212 = vmatprep.subr.mxu0 0.0
      %213 = vmatpush1.msra.mxu0 0.0
      %214 = vmatprep.subr.mxu0 0.0
      %215 = vmatpush1.msra.mxu0 0.0
      %216 = vmatprep.subr.mxu0 0.0
      %217 = vmatpush1.msra.mxu0 0.0
      %218 = vmatprep.subr.mxu0 0.0
      %219 = vmatpush1.msra.mxu0 0.0
      %220 = vmatprep.subr.mxu0 0.0
      %221 = vmatpush1.msra.mxu0 0.0
      %222 = vmatprep.subr.mxu0 0.0
      %223 = vmatpush1.msra.mxu0 0.0
      %224 = vmatprep.subr.mxu0 0.0
      %225 = vmatpush1.msra.mxu0 0.0
      %226 = vmatprep.subr.mxu0 0.0
      %227 = vmatpush1.msra.mxu0 0.0
      %228 = vmatprep.subr.mxu0 0.0
      %229 = vmatpush1.msra.mxu0 0.0
      %230 = vmatprep.subr.mxu0 0.0
      %231 = vmatpush1.msra.mxu0 0.0
      %232 = vmatprep.subr.mxu0 0.0
      %233 = vmatpush1.msra.mxu0 0.0
      %234 = vmatprep.subr.mxu0 0.0
      %235 = vmatpush1.msra.mxu0 0.0
      %236 = vmatprep.mubr.f32.mxu0 0.0
      %v237 = vand.u32 %v156, 4294901760
      %v238 = vsub.f32 %v156, %v237
      %v239 = vand.u32 %v238, 4294901760
      %v240 = vsub.f32 %v238, %v239
      %v241 = vand.u32 %v240, 4294901760
      %242 = vmatmul.mubr.f32.gmra.mrb[0].mxu0 %v241
      %v243 = vpop.f32.mrb[0].mxu0
      %v244 = vadd.f32 0.0, %v243
      %v245 = vpop.f32.mrb[0].mxu0
      %246 = vmatprep.mubr.f32.mxu0 0.0
      %v247 = vand.u32 %v159, 4294901760
      %v248 = vsub.f32 %v159, %v247
      %v249 = vand.u32 %v248, 4294901760
      %v250 = vsub.f32 %v248, %v249
      %v251 = vand.u32 %v250, 4294901760
      %252 = vmatmul.mubr.f32.gmra.mrb[0].mxu0 %v251
      %v253 = vpop.f32.mrb[0].mxu0
      %v254 = vadd.f32 0.0, %v253
      %v255 = vpop.f32.mrb[0].mxu0
      %256 = vmatprep.mubr.f32.mxu0 0.0
      %v257 = vand.u32 %v162, 4294901760
      %v258 = vsub.f32 %v162, %v257
      %v259 = vand.u32 %v258, 4294901760
      %v260 = vsub.f32 %v258, %v259
      %v261 = vand.u32 %v260, 4294901760
      %262 = vmatmul.mubr.f32.gmra.mrb[0].mxu0 %v261
      %v263 = vpop.f32.mrb[0].mxu0
      %v264 = vadd.f32 0.0, %v263
      %v265 = vpop.f32.mrb[0].mxu0
      %266 = vdwg.mxu0
      %267 = vmatprep.subr.mxu0 0.0
      %v268 = vand.u32 %v146, 4294901760
      %v269 = vsub.f32 %v146, %v268
      %v270 = vand.u32 %v269, 4294901760
      %v271 = vsub.f32 %v269, %v270
      %v272 = vand.u32 %v271, 4294901760
      %273 = vmatpush1.msra.mxu0 %v272
      %274 = vmatprep.subr.mxu0 0.0
      %v275 = vand.u32 %v147, 4294901760
      %v276 = vsub.f32 %v147, %v275
      %v277 = vand.u32 %v276, 4294901760
      %v278 = vsub.f32 %v276, %v277
      %v279 = vand.u32 %v278, 4294901760
      %280 = vmatpush1.msra.mxu0 %v279
      %281 = vmatprep.subr.mxu0 0.0
      %v282 = vand.u32 %v148, 4294901760
      %v283 = vsub.f32 %v148, %v282
      %v284 = vand.u32 %v283, 4294901760
      %v285 = vsub.f32 %v283, %v284
      %v286 = vand.u32 %v285, 4294901760
      %287 = vmatpush1.msra.mxu0 %v286
      %288 = vmatprep.subr.mxu0 0.0
      %v289 = vand.u32 %v149, 4294901760
      %v290 = vsub.f32 %v149, %v289
      %v291 = vand.u32 %v290, 4294901760
      %v292 = vsub.f32 %v290, %v291
      %v293 = vand.u32 %v292, 4294901760
      %294 = vmatpush1.msra.mxu0 %v293
      %295 = vmatprep.subr.mxu0 0.0
      %v296 = vand.u32 %v150, 4294901760
      %v297 = vsub.f32 %v150, %v296
      %v298 = vand.u32 %v297, 4294901760
      %v299 = vsub.f32 %v297, %v298
      %v300 = vand.u32 %v299, 4294901760
      %301 = vmatpush1.msra.mxu0 %v300
      %302 = vmatprep.subr.mxu0 0.0
      %v303 = vand.u32 %v151, 4294901760
      %v304 = vsub.f32 %v151, %v303
      %v305 = vand.u32 %v304, 4294901760
      %v306 = vsub.f32 %v304, %v305
      %v307 = vand.u32 %v306, 4294901760
      %308 = vmatpush1.msra.mxu0 %v307
      %309 = vmatprep.subr.mxu0 0.0
      %v310 = vand.u32 %v152, 4294901760
      %v311 = vsub.f32 %v152, %v310
      %v312 = vand.u32 %v311, 4294901760
      %v313 = vsub.f32 %v311, %v312
      %v314 = vand.u32 %v313, 4294901760
      %315 = vmatpush1.msra.mxu0 %v314
      %316 = vmatprep.subr.mxu0 0.0
      %v317 = vand.u32 %v153, 4294901760
      %v318 = vsub.f32 %v153, %v317
      %v319 = vand.u32 %v318, 4294901760
      %v320 = vsub.f32 %v318, %v319
      %v321 = vand.u32 %v320, 4294901760
      %322 = vmatpush1.msra.mxu0 %v321
      %323 = vmatprep.subr.mxu0 0.0
      %324 = vmatpush1.msra.mxu0 0.0
      %325 = vmatprep.subr.mxu0 0.0
      %326 = vmatpush1.msra.mxu0 0.0
      %327 = vmatprep.subr.mxu0 0.0
      %328 = vmatpush1.msra.mxu0 0.0
      %329 = vmatprep.subr.mxu0 0.0
      %330 = vmatpush1.msra.mxu0 0.0
      %331 = vmatprep.subr.mxu0 0.0
      %332 = vmatpush1.msra.mxu0 0.0
      %333 = vmatprep.subr.mxu0 0.0
      %334 = vmatpush1.msra.mxu0 0.0
      %335 = vmatprep.subr.mxu0 0.0
      %336 = vmatpush1.msra.mxu0 0.0
      %337 = vmatprep.subr.mxu0 0.0
      %338 = vmatpush1.msra.mxu0 0.0
      %339 = vmatprep.subr.mxu0 0.0
      %340 = vmatpush1.msra.mxu0 0.0
      %341 = vmatprep.subr.mxu0 0.0
      %342 = vmatpush1.msra.mxu0 0.0
      %343 = vmatprep.subr.mxu0 0.0
      %344 = vmatpush1.msra.mxu0 0.0
      %345 = vmatprep.subr.mxu0 0.0
      %346 = vmatpush1.msra.mxu0 0.0
      %347 = vmatprep.subr.mxu0 0.0
      %348 = vmatpush1.msra.mxu0 0.0
      %349 = vmatprep.subr.mxu0 0.0
      %350 = vmatpush1.msra.mxu0 0.0
      %351 = vmatprep.subr.mxu0 0.0
      %352 = vmatpush1.msra.mxu0 0.0
      %353 = vmatprep.subr.mxu0 0.0
      %354 = vmatpush1.msra.mxu0 0.0
      %355 = vmatprep.subr.mxu0 0.0
      %356 = vmatpush1.msra.mxu0 0.0
      %357 = vmatprep.subr.mxu0 0.0
      %358 = vmatpush1.msra.mxu0 0.0
      %359 = vmatprep.subr.mxu0 0.0
      %360 = vmatpush1.msra.mxu0 0.0
      %361 = vmatprep.subr.mxu0 0.0
      %362 = vmatpush1.msra.mxu0 0.0
      %363 = vmatprep.subr.mxu0 0.0
      %364 = vmatpush1.msra.mxu0 0.0
      %365 = vmatprep.subr.mxu0 0.0
      %366 = vmatpush1.msra.mxu0 0.0
      %367 = vmatprep.subr.mxu0 0.0
      %368 = vmatpush1.msra.mxu0 0.0
      %369 = vmatprep.subr.mxu0 0.0
      %370 = vmatpush1.msra.mxu0 0.0
      %371 = vmatprep.mubr.f32.mxu0 0.0
      %v372 = vand.u32 %v156, 4294901760
      %373 = vmatmul.mubr.f32.gmra.mrb[0].mxu0 %v372
      %v374 = vpop.f32.mrb[0].mxu0
      %v375 = vadd.f32 %v244, %v374
      %v376 = vpop.f32.mrb[0].mxu0
      %377 = vmatprep.mubr.f32.mxu0 0.0
      %v378 = vand.u32 %v159, 4294901760
      %379 = vmatmul.mubr.f32.gmra.mrb[0].mxu0 %v378
      %v380 = vpop.f32.mrb[0].mxu0
      %v381 = vadd.f32 %v254, %v380
      %v382 = vpop.f32.mrb[0].mxu0
      %383 = vmatprep.mubr.f32.mxu0 0.0
      %v384 = vand.u32 %v162, 4294901760
      %385 = vmatmul.mubr.f32.gmra.mrb[0].mxu0 %v384
      %v386 = vpop.f32.mrb[0].mxu0
      %v387 = vadd.f32 %v264, %v386
      %v388 = vpop.f32.mrb[0].mxu0
      %389 = vdwg.mxu0
      %390 = vmatprep.subr.mxu0 0.0
      %v391 = vand.u32 %v146, 4294901760
      %v392 = vsub.f32 %v146, %v391
      %393 = vmatpush1.msra.mxu0 %v392
      %394 = vmatprep.subr.mxu0 0.0
      %v395 = vand.u32 %v147, 4294901760
      %v396 = vsub.f32 %v147, %v395
      %397 = vmatpush1.msra.mxu0 %v396
      %398 = vmatprep.subr.mxu0 0.0
      %v399 = vand.u32 %v148, 4294901760
      %v400 = vsub.f32 %v148, %v399
      %401 = vmatpush1.msra.mxu0 %v400
      %402 = vmatprep.subr.mxu0 0.0
      %v403 = vand.u32 %v149, 4294901760
      %v404 = vsub.f32 %v149, %v403
      %405 = vmatpush1.msra.mxu0 %v404
      %406 = vmatprep.subr.mxu0 0.0
      %v407 = vand.u32 %v150, 4294901760
      %v408 = vsub.f32 %v150, %v407
      %409 = vmatpush1.msra.mxu0 %v408
      %410 = vmatprep.subr.mxu0 0.0
      %v411 = vand.u32 %v151, 4294901760
      %v412 = vsub.f32 %v151, %v411
      %413 = vmatpush1.msra.mxu0 %v412
      %414 = vmatprep.subr.mxu0 0.0
      %v415 = vand.u32 %v152, 4294901760
      %v416 = vsub.f32 %v152, %v415
      %417 = vmatpush1.msra.mxu0 %v416
      %418 = vmatprep.subr.mxu0 0.0
      %v419 = vand.u32 %v153, 4294901760
      %v420 = vsub.f32 %v153, %v419
      %421 = vmatpush1.msra.mxu0 %v420
      %422 = vmatprep.subr.mxu0 0.0
      %423 = vmatpush1.msra.mxu0 0.0
      %424 = vmatprep.subr.mxu0 0.0
      %425 = vmatpush1.msra.mxu0 0.0
      %426 = vmatprep.subr.mxu0 0.0
      %427 = vmatpush1.msra.mxu0 0.0
      %428 = vmatprep.subr.mxu0 0.0
      %429 = vmatpush1.msra.mxu0 0.0
      %430 = vmatprep.subr.mxu0 0.0
      %431 = vmatpush1.msra.mxu0 0.0
      %432 = vmatprep.subr.mxu0 0.0
      %433 = vmatpush1.msra.mxu0 0.0
      %434 = vmatprep.subr.mxu0 0.0
      %435 = vmatpush1.msra.mxu0 0.0
      %436 = vmatprep.subr.mxu0 0.0
      %437 = vmatpush1.msra.mxu0 0.0
      %438 = vmatprep.subr.mxu0 0.0
      %439 = vmatpush1.msra.mxu0 0.0
      %440 = vmatprep.subr.mxu0 0.0
      %441 = vmatpush1.msra.mxu0 0.0
      %442 = vmatprep.subr.mxu0 0.0
      %443 = vmatpush1.msra.mxu0 0.0
      %444 = vmatprep.subr.mxu0 0.0
      %445 = vmatpush1.msra.mxu0 0.0
      %446 = vmatprep.subr.mxu0 0.0
      %447 = vmatpush1.msra.mxu0 0.0
      %448 = vmatprep.subr.mxu0 0.0
      %449 = vmatpush1.msra.mxu0 0.0
      %450 = vmatprep.subr.mxu0 0.0
      %451 = vmatpush1.msra.mxu0 0.0
      %452 = vmatprep.subr.mxu0 0.0
      %453 = vmatpush1.msra.mxu0 0.0
      %454 = vmatprep.subr.mxu0 0.0
      %455 = vmatpush1.msra.mxu0 0.0
      %456 = vmatprep.subr.mxu0 0.0
      %457 = vmatpush1.msra.mxu0 0.0
      %458 = vmatprep.subr.mxu0 0.0
      %459 = vmatpush1.msra.mxu0 0.0
      %460 = vmatprep.subr.mxu0 0.0
      %461 = vmatpush1.msra.mxu0 0.0
      %462 = vmatprep.subr.mxu0 0.0
      %463 = vmatpush1.msra.mxu0 0.0
      %464 = vmatprep.subr.mxu0 0.0
      %465 = vmatpush1.msra.mxu0 0.0
      %466 = vmatprep.subr.mxu0 0.0
      %467 = vmatpush1.msra.mxu0 0.0
      %468 = vmatprep.subr.mxu0 0.0
      %469 = vmatpush1.msra.mxu0 0.0
      %470 = vmatprep.mubr.f32.mxu0 0.0
      %v471 = vand.u32 %v156, 4294901760
      %v472 = vsub.f32 %v156, %v471
      %473 = vmatmul.mubr.f32.gmra.mrb[0].mxu0 %v472
      %v474 = vpop.f32.mrb[0].mxu0
      %v475 = vadd.f32 %v375, %v474
      %v476 = vpop.f32.mrb[0].mxu0
      %477 = vmatprep.mubr.f32.mxu0 0.0
      %v478 = vand.u32 %v159, 4294901760
      %v479 = vsub.f32 %v159, %v478
      %480 = vmatmul.mubr.f32.gmra.mrb[0].mxu0 %v479
      %v481 = vpop.f32.mrb[0].mxu0
      %v482 = vadd.f32 %v381, %v481
      %v483 = vpop.f32.mrb[0].mxu0
      %484 = vmatprep.mubr.f32.mxu0 0.0
      %v485 = vand.u32 %v162, 4294901760
      %v486 = vsub.f32 %v162, %v485
      %487 = vmatmul.mubr.f32.gmra.mrb[0].mxu0 %v486
      %v488 = vpop.f32.mrb[0].mxu0
      %v489 = vadd.f32 %v387, %v488
      %v490 = vpop.f32.mrb[0].mxu0
      %491 = vdwg.mxu0
      %492 = vmatprep.subr.mxu0 0.0
      %v493 = vand.u32 %v146, 4294901760
      %494 = vmatpush1.msra.mxu0 %v493
      %495 = vmatprep.subr.mxu0 0.0
      %v496 = vand.u32 %v147, 4294901760
      %497 = vmatpush1.msra.mxu0 %v496
      %498 = vmatprep.subr.mxu0 0.0
      %v499 = vand.u32 %v148, 4294901760
      %500 = vmatpush1.msra.mxu0 %v499
      %501 = vmatprep.subr.mxu0 0.0
      %v502 = vand.u32 %v149, 4294901760
      %503 = vmatpush1.msra.mxu0 %v502
      %504 = vmatprep.subr.mxu0 0.0
      %v505 = vand.u32 %v150, 4294901760
      %506 = vmatpush1.msra.mxu0 %v505
      %507 = vmatprep.subr.mxu0 0.0
      %v508 = vand.u32 %v151, 4294901760
      %509 = vmatpush1.msra.mxu0 %v508
      %510 = vmatprep.subr.mxu0 0.0
      %v511 = vand.u32 %v152, 4294901760
      %512 = vmatpush1.msra.mxu0 %v511
      %513 = vmatprep.subr.mxu0 0.0
      %v514 = vand.u32 %v153, 4294901760
      %515 = vmatpush1.msra.mxu0 %v514
      %516 = vmatprep.subr.mxu0 0.0
      %517 = vmatpush1.msra.mxu0 0.0
      %518 = vmatprep.subr.mxu0 0.0
      %519 = vmatpush1.msra.mxu0 0.0
      %520 = vmatprep.subr.mxu0 0.0
      %521 = vmatpush1.msra.mxu0 0.0
      %522 = vmatprep.subr.mxu0 0.0
      %523 = vmatpush1.msra.mxu0 0.0
      %524 = vmatprep.subr.mxu0 0.0
      %525 = vmatpush1.msra.mxu0 0.0
      %526 = vmatprep.subr.mxu0 0.0
      %527 = vmatpush1.msra.mxu0 0.0
      %528 = vmatprep.subr.mxu0 0.0
      %529 = vmatpush1.msra.mxu0 0.0
      %530 = vmatprep.subr.mxu0 0.0
      %531 = vmatpush1.msra.mxu0 0.0
      %532 = vmatprep.subr.mxu0 0.0
      %533 = vmatpush1.msra.mxu0 0.0
      %534 = vmatprep.subr.mxu0 0.0
      %535 = vmatpush1.msra.mxu0 0.0
      %536 = vmatprep.subr.mxu0 0.0
      %537 = vmatpush1.msra.mxu0 0.0
      %538 = vmatprep.subr.mxu0 0.0
      %539 = vmatpush1.msra.mxu0 0.0
      %540 = vmatprep.subr.mxu0 0.0
      %541 = vmatpush1.msra.mxu0 0.0
      %542 = vmatprep.subr.mxu0 0.0
      %543 = vmatpush1.msra.mxu0 0.0
      %544 = vmatprep.subr.mxu0 0.0
      %545 = vmatpush1.msra.mxu0 0.0
      %546 = vmatprep.subr.mxu0 0.0
      %547 = vmatpush1.msra.mxu0 0.0
      %548 = vmatprep.subr.mxu0 0.0
      %549 = vmatpush1.msra.mxu0 0.0
      %550 = vmatprep.subr.mxu0 0.0
      %551 = vmatpush1.msra.mxu0 0.0
      %552 = vmatprep.subr.mxu0 0.0
      %553 = vmatpush1.msra.mxu0 0.0
      %554 = vmatprep.subr.mxu0 0.0
      %555 = vmatpush1.msra.mxu0 0.0
      %556 = vmatprep.subr.mxu0 0.0
      %557 = vmatpush1.msra.mxu0 0.0
      %558 = vmatprep.subr.mxu0 0.0
      %559 = vmatpush1.msra.mxu0 0.0
      %560 = vmatprep.subr.mxu0 0.0
      %561 = vmatpush1.msra.mxu0 0.0
      %562 = vmatprep.subr.mxu0 0.0
      %563 = vmatpush1.msra.mxu0 0.0
      %564 = vmatprep.mubr.f32.mxu0 0.0
      %v565 = vand.u32 %v156, 4294901760
      %v566 = vsub.f32 %v156, %v565
      %v567 = vand.u32 %v566, 4294901760
      %568 = vmatmul.mubr.f32.gmra.mrb[0].mxu0 %v567
      %v569 = vpop.f32.mrb[0].mxu0
      %v570 = vadd.f32 %v475, %v569
      %v571 = vpop.f32.mrb[0].mxu0
      %572 = vmatprep.mubr.f32.mxu0 0.0
      %v573 = vand.u32 %v159, 4294901760
      %v574 = vsub.f32 %v159, %v573
      %v575 = vand.u32 %v574, 4294901760
      %576 = vmatmul.mubr.f32.gmra.mrb[0].mxu0 %v575
      %v577 = vpop.f32.mrb[0].mxu0
      %v578 = vadd.f32 %v482, %v577
      %v579 = vpop.f32.mrb[0].mxu0
      %580 = vmatprep.mubr.f32.mxu0 0.0
      %v581 = vand.u32 %v162, 4294901760
      %v582 = vsub.f32 %v162, %v581
      %v583 = vand.u32 %v582, 4294901760
      %584 = vmatmul.mubr.f32.gmra.mrb[0].mxu0 %v583
      %v585 = vpop.f32.mrb[0].mxu0
      %v586 = vadd.f32 %v489, %v585
      %v587 = vpop.f32.mrb[0].mxu0
      %588 = vdwg.mxu0
      %589 = vmatprep.subr.mxu0 0.0
      %v590 = vand.u32 %v146, 4294901760
      %v591 = vsub.f32 %v146, %v590
      %v592 = vand.u32 %v591, 4294901760
      %593 = vmatpush1.msra.mxu0 %v592
      %594 = vmatprep.subr.mxu0 0.0
      %v595 = vand.u32 %v147, 4294901760
      %v596 = vsub.f32 %v147, %v595
      %v597 = vand.u32 %v596, 4294901760
      %598 = vmatpush1.msra.mxu0 %v597
      %599 = vmatprep.subr.mxu0 0.0
      %v600 = vand.u32 %v148, 4294901760
      %v601 = vsub.f32 %v148, %v600
      %v602 = vand.u32 %v601, 4294901760
      %603 = vmatpush1.msra.mxu0 %v602
      %604 = vmatprep.subr.mxu0 0.0
      %v605 = vand.u32 %v149, 4294901760
      %v606 = vsub.f32 %v149, %v605
      %v607 = vand.u32 %v606, 4294901760
      %608 = vmatpush1.msra.mxu0 %v607
      %609 = vmatprep.subr.mxu0 0.0
      %v610 = vand.u32 %v150, 4294901760
      %v611 = vsub.f32 %v150, %v610
      %v612 = vand.u32 %v611, 4294901760
      %613 = vmatpush1.msra.mxu0 %v612
      %614 = vmatprep.subr.mxu0 0.0
      %v615 = vand.u32 %v151, 4294901760
      %v616 = vsub.f32 %v151, %v615
      %v617 = vand.u32 %v616, 4294901760
      %618 = vmatpush1.msra.mxu0 %v617
      %619 = vmatprep.subr.mxu0 0.0
      %v620 = vand.u32 %v152, 4294901760
      %v621 = vsub.f32 %v152, %v620
      %v622 = vand.u32 %v621, 4294901760
      %623 = vmatpush1.msra.mxu0 %v622
      %624 = vmatprep.subr.mxu0 0.0
      %v625 = vand.u32 %v153, 4294901760
      %v626 = vsub.f32 %v153, %v625
      %v627 = vand.u32 %v626, 4294901760
      %628 = vmatpush1.msra.mxu0 %v627
      %629 = vmatprep.subr.mxu0 0.0
      %630 = vmatpush1.msra.mxu0 0.0
      %631 = vmatprep.subr.mxu0 0.0
      %632 = vmatpush1.msra.mxu0 0.0
      %633 = vmatprep.subr.mxu0 0.0
      %634 = vmatpush1.msra.mxu0 0.0
      %635 = vmatprep.subr.mxu0 0.0
      %636 = vmatpush1.msra.mxu0 0.0
      %637 = vmatprep.subr.mxu0 0.0
      %638 = vmatpush1.msra.mxu0 0.0
      %639 = vmatprep.subr.mxu0 0.0
      %640 = vmatpush1.msra.mxu0 0.0
      %641 = vmatprep.subr.mxu0 0.0
      %642 = vmatpush1.msra.mxu0 0.0
      %643 = vmatprep.subr.mxu0 0.0
      %644 = vmatpush1.msra.mxu0 0.0
      %645 = vmatprep.subr.mxu0 0.0
      %646 = vmatpush1.msra.mxu0 0.0
      %647 = vmatprep.subr.mxu0 0.0
      %648 = vmatpush1.msra.mxu0 0.0
      %649 = vmatprep.subr.mxu0 0.0
      %650 = vmatpush1.msra.mxu0 0.0
      %651 = vmatprep.subr.mxu0 0.0
      %652 = vmatpush1.msra.mxu0 0.0
      %653 = vmatprep.subr.mxu0 0.0
      %654 = vmatpush1.msra.mxu0 0.0
      %655 = vmatprep.subr.mxu0 0.0
      %656 = vmatpush1.msra.mxu0 0.0
      %657 = vmatprep.subr.mxu0 0.0
      %658 = vmatpush1.msra.mxu0 0.0
      %659 = vmatprep.subr.mxu0 0.0
      %660 = vmatpush1.msra.mxu0 0.0
      %661 = vmatprep.subr.mxu0 0.0
      %662 = vmatpush1.msra.mxu0 0.0
      %663 = vmatprep.subr.mxu0 0.0
      %664 = vmatpush1.msra.mxu0 0.0
      %665 = vmatprep.subr.mxu0 0.0
      %666 = vmatpush1.msra.mxu0 0.0
      %667 = vmatprep.subr.mxu0 0.0
      %668 = vmatpush1.msra.mxu0 0.0
      %669 = vmatprep.subr.mxu0 0.0
      %670 = vmatpush1.msra.mxu0 0.0
      %671 = vmatprep.subr.mxu0 0.0
      %672 = vmatpush1.msra.mxu0 0.0
      %673 = vmatprep.subr.mxu0 0.0
      %674 = vmatpush1.msra.mxu0 0.0
      %675 = vmatprep.subr.mxu0 0.0
      %676 = vmatpush1.msra.mxu0 0.0
      %677 = vmatprep.mubr.f32.mxu0 0.0
      %v678 = vand.u32 %v156, 4294901760
      %679 = vmatmul.mubr.f32.gmra.mrb[0].mxu0 %v678
      %v680 = vpop.f32.mrb[0].mxu0
      %v681 = vadd.f32 %v570, %v680
      %v682 = vpop.f32.mrb[0].mxu0
      %683 = vmatprep.mubr.f32.mxu0 0.0
      %v684 = vand.u32 %v159, 4294901760
      %685 = vmatmul.mubr.f32.gmra.mrb[0].mxu0 %v684
      %v686 = vpop.f32.mrb[0].mxu0
      %v687 = vadd.f32 %v578, %v686
      %v688 = vpop.f32.mrb[0].mxu0
      %689 = vmatprep.mubr.f32.mxu0 0.0
      %v690 = vand.u32 %v162, 4294901760
      %691 = vmatmul.mubr.f32.gmra.mrb[0].mxu0 %v690
      %v692 = vpop.f32.mrb[0].mxu0
      %v693 = vadd.f32 %v586, %v692
      %v694 = vpop.f32.mrb[0].mxu0
      %695 = vdwg.mxu0
      %696 = vmatprep.subr.mxu0 0.0
      %v697 = vand.u32 %v146, 4294901760
      %698 = vmatpush1.msra.mxu0 %v697
      %699 = vmatprep.subr.mxu0 0.0
      %v700 = vand.u32 %v147, 4294901760
      %701 = vmatpush1.msra.mxu0 %v700
      %702 = vmatprep.subr.mxu0 0.0
      %v703 = vand.u32 %v148, 4294901760
      %704 = vmatpush1.msra.mxu0 %v703
      %705 = vmatprep.subr.mxu0 0.0
      %v706 = vand.u32 %v149, 4294901760
      %707 = vmatpush1.msra.mxu0 %v706
      %708 = vmatprep.subr.mxu0 0.0
      %v709 = vand.u32 %v150, 4294901760
      %710 = vmatpush1.msra.mxu0 %v709
      %711 = vmatprep.subr.mxu0 0.0
      %v712 = vand.u32 %v151, 4294901760
      %713 = vmatpush1.msra.mxu0 %v712
      %714 = vmatprep.subr.mxu0 0.0
      %v715 = vand.u32 %v152, 4294901760
      %716 = vmatpush1.msra.mxu0 %v715
      %717 = vmatprep.subr.mxu0 0.0
      %v718 = vand.u32 %v153, 4294901760
      %719 = vmatpush1.msra.mxu0 %v718
      %720 = vmatprep.subr.mxu0 0.0
      %721 = vmatpush1.msra.mxu0 0.0
      %722 = vmatprep.subr.mxu0 0.0
      %723 = vmatpush1.msra.mxu0 0.0
      %724 = vmatprep.subr.mxu0 0.0
      %725 = vmatpush1.msra.mxu0 0.0
      %726 = vmatprep.subr.mxu0 0.0
      %727 = vmatpush1.msra.mxu0 0.0
      %728 = vmatprep.subr.mxu0 0.0
      %729 = vmatpush1.msra.mxu0 0.0
      %730 = vmatprep.subr.mxu0 0.0
      %731 = vmatpush1.msra.mxu0 0.0
      %732 = vmatprep.subr.mxu0 0.0
      %733 = vmatpush1.msra.mxu0 0.0
      %734 = vmatprep.subr.mxu0 0.0
      %735 = vmatpush1.msra.mxu0 0.0
      %736 = vmatprep.subr.mxu0 0.0
      %737 = vmatpush1.msra.mxu0 0.0
      %738 = vmatprep.subr.mxu0 0.0
      %739 = vmatpush1.msra.mxu0 0.0
      %740 = vmatprep.subr.mxu0 0.0
      %741 = vmatpush1.msra.mxu0 0.0
      %742 = vmatprep.subr.mxu0 0.0
      %743 = vmatpush1.msra.mxu0 0.0
      %744 = vmatprep.subr.mxu0 0.0
      %745 = vmatpush1.msra.mxu0 0.0
      %746 = vmatprep.subr.mxu0 0.0
      %747 = vmatpush1.msra.mxu0 0.0
      %748 = vmatprep.subr.mxu0 0.0
      %749 = vmatpush1.msra.mxu0 0.0
      %750 = vmatprep.subr.mxu0 0.0
      %751 = vmatpush1.msra.mxu0 0.0
      %752 = vmatprep.subr.mxu0 0.0
      %753 = vmatpush1.msra.mxu0 0.0
      %754 = vmatprep.subr.mxu0 0.0
      %755 = vmatpush1.msra.mxu0 0.0
      %756 = vmatprep.subr.mxu0 0.0
      %757 = vmatpush1.msra.mxu0 0.0
      %758 = vmatprep.subr.mxu0 0.0
      %759 = vmatpush1.msra.mxu0 0.0
      %760 = vmatprep.subr.mxu0 0.0
      %761 = vmatpush1.msra.mxu0 0.0
      %762 = vmatprep.subr.mxu0 0.0
      %763 = vmatpush1.msra.mxu0 0.0
      %764 = vmatprep.subr.mxu0 0.0
      %765 = vmatpush1.msra.mxu0 0.0
      %766 = vmatprep.subr.mxu0 0.0
      %767 = vmatpush1.msra.mxu0 0.0
      %768 = vmatprep.mubr.f32.mxu0 0.0
      %v769 = vand.u32 %v156, 4294901760
      %770 = vmatmul.mubr.f32.gmra.mrb[0].mxu0 %v769
      %v771 = vpop.f32.mrb[0].mxu0
      %v772 = vadd.f32 %v681, %v771
      %v773 = vpop.f32.mrb[0].mxu0
      %774 = vmatprep.mubr.f32.mxu0 0.0
      %v775 = vand.u32 %v159, 4294901760
      %776 = vmatmul.mubr.f32.gmra.mrb[0].mxu0 %v775
      %v777 = vpop.f32.mrb[0].mxu0
      %v778 = vadd.f32 %v687, %v777
      %v779 = vpop.f32.mrb[0].mxu0
      %780 = vmatprep.mubr.f32.mxu0 0.0
      %v781 = vand.u32 %v162, 4294901760
      %782 = vmatmul.mubr.f32.gmra.mrb[0].mxu0 %v781
      %v783 = vpop.f32.mrb[0].mxu0
      %v784 = vadd.f32 %v693, %v783
      %v785 = vpop.f32.mrb[0].mxu0
      %786 = vdwg.mxu0
      %v787 = vmul.f32 %v772, 0.03125
      %v788 = vmul.f32 %v778, 0.03125
      %v789 = vmul.f32 %v784, 0.03125
      %vm790 = vcmask 15360
      %v792 = vsel %vm790, %v787, 0
      %v795 = vsel %vm790, %v788, 0
      %v798 = vsel %vm790, %v789, 0
      %vm800 = vcmask 1041408
      %v802 = vsel %vm800, %v154, 0
      %804 = vmatprep.subr.mxu0 0.0
      %v805 = vand.u32 %v802, 4294901760
      %806 = vmatpush1.msra.mxu0 %v805
      %807 = vmatprep.subr.mxu0 0.0
      %808 = vmatpush1.msra.mxu0 0.0
      %809 = vmatprep.subr.mxu0 0.0
      %810 = vmatpush1.msra.mxu0 0.0
      %811 = vmatprep.subr.mxu0 0.0
      %812 = vmatpush1.msra.mxu0 0.0
      %813 = vmatprep.subr.mxu0 0.0
      %814 = vmatpush1.msra.mxu0 0.0
      %815 = vmatprep.subr.mxu0 0.0
      %816 = vmatpush1.msra.mxu0 0.0
      %817 = vmatprep.subr.mxu0 0.0
      %818 = vmatpush1.msra.mxu0 0.0
      %819 = vmatprep.subr.mxu0 0.0
      %820 = vmatpush1.msra.mxu0 0.0
      %821 = vmatprep.subr.mxu0 0.0
      %822 = vmatpush1.msra.mxu0 0.0
      %823 = vmatprep.subr.mxu0 0.0
      %824 = vmatpush1.msra.mxu0 0.0
      %825 = vmatprep.subr.mxu0 0.0
      %826 = vmatpush1.msra.mxu0 0.0
      %827 = vmatprep.subr.mxu0 0.0
      %828 = vmatpush1.msra.mxu0 0.0
      %829 = vmatprep.subr.mxu0 0.0
      %830 = vmatpush1.msra.mxu0 0.0
      %831 = vmatprep.subr.mxu0 0.0
      %832 = vmatpush1.msra.mxu0 0.0
      %833 = vmatprep.subr.mxu0 0.0
      %834 = vmatpush1.msra.mxu0 0.0
      %835 = vmatprep.subr.mxu0 0.0
      %836 = vmatpush1.msra.mxu0 0.0
      %837 = vmatprep.subr.mxu0 0.0
      %838 = vmatpush1.msra.mxu0 0.0
      %839 = vmatprep.subr.mxu0 0.0
      %840 = vmatpush1.msra.mxu0 0.0
      %841 = vmatprep.subr.mxu0 0.0
      %842 = vmatpush1.msra.mxu0 0.0
      %843 = vmatprep.subr.mxu0 0.0
      %844 = vmatpush1.msra.mxu0 0.0
      %845 = vmatprep.subr.mxu0 0.0
      %846 = vmatpush1.msra.mxu0 0.0
      %847 = vmatprep.subr.mxu0 0.0
      %848 = vmatpush1.msra.mxu0 0.0
      %849 = vmatprep.subr.mxu0 0.0
      %850 = vmatpush1.msra.mxu0 0.0
      %851 = vmatprep.subr.mxu0 0.0
      %852 = vmatpush1.msra.mxu0 0.0
      %853 = vmatprep.subr.mxu0 0.0
      %854 = vmatpush1.msra.mxu0 0.0
      %855 = vmatprep.subr.mxu0 0.0
      %856 = vmatpush1.msra.mxu0 0.0
      %857 = vmatprep.subr.mxu0 0.0
      %858 = vmatpush1.msra.mxu0 0.0
      %859 = vmatprep.subr.mxu0 0.0
      %860 = vmatpush1.msra.mxu0 0.0
      %861 = vmatprep.subr.mxu0 0.0
      %862 = vmatpush1.msra.mxu0 0.0
      %863 = vmatprep.subr.mxu0 0.0
      %864 = vmatpush1.msra.mxu0 0.0
      %865 = vmatprep.subr.mxu0 0.0
      %866 = vmatpush1.msra.mxu0 0.0
      %867 = vmatprep.subr.mxu0 0.0
      %868 = vmatpush1.msra.mxu0 0.0
      %869 = vmatprep.mubr.f32.mxu0 0.0
      %v870 = vand.u32 %v792, 4294901760
      %v871 = vsub.f32 %v792, %v870
      %v872 = vand.u32 %v871, 4294901760
      %v873 = vsub.f32 %v871, %v872
      %v874 = vand.u32 %v873, 4294901760
      %875 = vmatmul.mubr.f32.gmra.mrb[0].mxu0 %v874
      %v876 = vpop.f32.mrb[0].mxu0
      %v877 = vadd.f32 0.0, %v876
      %v878 = vpop.f32.mrb[0].mxu0
      %879 = vmatprep.mubr.f32.mxu0 0.0
      %v880 = vand.u32 %v795, 4294901760
      %v881 = vsub.f32 %v795, %v880
      %v882 = vand.u32 %v881, 4294901760
      %v883 = vsub.f32 %v881, %v882
      %v884 = vand.u32 %v883, 4294901760
      %885 = vmatmul.mubr.f32.gmra.mrb[0].mxu0 %v884
      %v886 = vpop.f32.mrb[0].mxu0
      %v887 = vadd.f32 0.0, %v886
      %v888 = vpop.f32.mrb[0].mxu0
      %889 = vmatprep.mubr.f32.mxu0 0.0
      %v890 = vand.u32 %v798, 4294901760
      %v891 = vsub.f32 %v798, %v890
      %v892 = vand.u32 %v891, 4294901760
      %v893 = vsub.f32 %v891, %v892
      %v894 = vand.u32 %v893, 4294901760
      %895 = vmatmul.mubr.f32.gmra.mrb[0].mxu0 %v894
      %v896 = vpop.f32.mrb[0].mxu0
      %v897 = vadd.f32 0.0, %v896
      %v898 = vpop.f32.mrb[0].mxu0
      %899 = vdwg.mxu0
      %900 = vmatprep.subr.mxu0 0.0
      %v901 = vand.u32 %v802, 4294901760
      %v902 = vsub.f32 %v802, %v901
      %v903 = vand.u32 %v902, 4294901760
      %v904 = vsub.f32 %v902, %v903
      %v905 = vand.u32 %v904, 4294901760
      %906 = vmatpush1.msra.mxu0 %v905
      %907 = vmatprep.subr.mxu0 0.0
      %908 = vmatpush1.msra.mxu0 0.0
      %909 = vmatprep.subr.mxu0 0.0
      %910 = vmatpush1.msra.mxu0 0.0
      %911 = vmatprep.subr.mxu0 0.0
      %912 = vmatpush1.msra.mxu0 0.0
      %913 = vmatprep.subr.mxu0 0.0
      %914 = vmatpush1.msra.mxu0 0.0
      %915 = vmatprep.subr.mxu0 0.0
      %916 = vmatpush1.msra.mxu0 0.0
      %917 = vmatprep.subr.mxu0 0.0
      %918 = vmatpush1.msra.mxu0 0.0
      %919 = vmatprep.subr.mxu0 0.0
      %920 = vmatpush1.msra.mxu0 0.0
      %921 = vmatprep.subr.mxu0 0.0
      %922 = vmatpush1.msra.mxu0 0.0
      %923 = vmatprep.subr.mxu0 0.0
      %924 = vmatpush1.msra.mxu0 0.0
      %925 = vmatprep.subr.mxu0 0.0
      %926 = vmatpush1.msra.mxu0 0.0
      %927 = vmatprep.subr.mxu0 0.0
      %928 = vmatpush1.msra.mxu0 0.0
      %929 = vmatprep.subr.mxu0 0.0
      %930 = vmatpush1.msra.mxu0 0.0
      %931 = vmatprep.subr.mxu0 0.0
      %932 = vmatpush1.msra.mxu0 0.0
      %933 = vmatprep.subr.mxu0 0.0
      %934 = vmatpush1.msra.mxu0 0.0
      %935 = vmatprep.subr.mxu0 0.0
      %936 = vmatpush1.msra.mxu0 0.0
      %937 = vmatprep.subr.mxu0 0.0
      %938 = vmatpush1.msra.mxu0 0.0
      %939 = vmatprep.subr.mxu0 0.0
      %940 = vmatpush1.msra.mxu0 0.0
      %941 = vmatprep.subr.mxu0 0.0
      %942 = vmatpush1.msra.mxu0 0.0
      %943 = vmatprep.subr.mxu0 0.0
      %944 = vmatpush1.msra.mxu0 0.0
      %945 = vmatprep.subr.mxu0 0.0
      %946 = vmatpush1.msra.mxu0 0.0
      %947 = vmatprep.subr.mxu0 0.0
      %948 = vmatpush1.msra.mxu0 0.0
      %949 = vmatprep.subr.mxu0 0.0
      %950 = vmatpush1.msra.mxu0 0.0
      %951 = vmatprep.subr.mxu0 0.0
      %952 = vmatpush1.msra.mxu0 0.0
      %953 = vmatprep.subr.mxu0 0.0
      %954 = vmatpush1.msra.mxu0 0.0
      %955 = vmatprep.subr.mxu0 0.0
      %956 = vmatpush1.msra.mxu0 0.0
      %957 = vmatprep.subr.mxu0 0.0
      %958 = vmatpush1.msra.mxu0 0.0
      %959 = vmatprep.subr.mxu0 0.0
      %960 = vmatpush1.msra.mxu0 0.0
      %961 = vmatprep.subr.mxu0 0.0
      %962 = vmatpush1.msra.mxu0 0.0
      %963 = vmatprep.subr.mxu0 0.0
      %964 = vmatpush1.msra.mxu0 0.0
      %965 = vmatprep.subr.mxu0 0.0
      %966 = vmatpush1.msra.mxu0 0.0
      %967 = vmatprep.subr.mxu0 0.0
      %968 = vmatpush1.msra.mxu0 0.0
      %969 = vmatprep.mubr.f32.mxu0 0.0
      %v970 = vand.u32 %v792, 4294901760
      %971 = vmatmul.mubr.f32.gmra.mrb[0].mxu0 %v970
      %v972 = vpop.f32.mrb[0].mxu0
      %v973 = vadd.f32 %v877, %v972
      %v974 = vpop.f32.mrb[0].mxu0
      %975 = vmatprep.mubr.f32.mxu0 0.0
      %v976 = vand.u32 %v795, 4294901760
      %977 = vmatmul.mubr.f32.gmra.mrb[0].mxu0 %v976
      %v978 = vpop.f32.mrb[0].mxu0
      %v979 = vadd.f32 %v887, %v978
      %v980 = vpop.f32.mrb[0].mxu0
      %981 = vmatprep.mubr.f32.mxu0 0.0
      %v982 = vand.u32 %v798, 4294901760
      %983 = vmatmul.mubr.f32.gmra.mrb[0].mxu0 %v982
      %v984 = vpop.f32.mrb[0].mxu0
      %v985 = vadd.f32 %v897, %v984
      %v986 = vpop.f32.mrb[0].mxu0
      %987 = vdwg.mxu0
      %988 = vmatprep.subr.mxu0 0.0
      %v989 = vand.u32 %v802, 4294901760
      %v990 = vsub.f32 %v802, %v989
      %991 = vmatpush1.msra.mxu0 %v990
      %992 = vmatprep.subr.mxu0 0.0
      %993 = vmatpush1.msra.mxu0 0.0
      %994 = vmatprep.subr.mxu0 0.0
      %995 = vmatpush1.msra.mxu0 0.0
      %996 = vmatprep.subr.mxu0 0.0
      %997 = vmatpush1.msra.mxu0 0.0
      %998 = vmatprep.subr.mxu0 0.0
      %999 = vmatpush1.msra.mxu0 0.0
      %1000 = vmatprep.subr.mxu0 0.0
      %1001 = vmatpush1.msra.mxu0 0.0
      %1002 = vmatprep.subr.mxu0 0.0
      %1003 = vmatpush1.msra.mxu0 0.0
      %1004 = vmatprep.subr.mxu0 0.0
      %1005 = vmatpush1.msra.mxu0 0.0
      %1006 = vmatprep.subr.mxu0 0.0
      %1007 = vmatpush1.msra.mxu0 0.0
      %1008 = vmatprep.subr.mxu0 0.0
      %1009 = vmatpush1.msra.mxu0 0.0
      %1010 = vmatprep.subr.mxu0 0.0
      %1011 = vmatpush1.msra.mxu0 0.0
      %1012 = vmatprep.subr.mxu0 0.0
      %1013 = vmatpush1.msra.mxu0 0.0
      %1014 = vmatprep.subr.mxu0 0.0
      %1015 = vmatpush1.msra.mxu0 0.0
      %1016 = vmatprep.subr.mxu0 0.0
      %1017 = vmatpush1.msra.mxu0 0.0
      %1018 = vmatprep.subr.mxu0 0.0
      %1019 = vmatpush1.msra.mxu0 0.0
      %1020 = vmatprep.subr.mxu0 0.0
      %1021 = vmatpush1.msra.mxu0 0.0
      %1022 = vmatprep.subr.mxu0 0.0
      %1023 = vmatpush1.msra.mxu0 0.0
      %1024 = vmatprep.subr.mxu0 0.0
      %1025 = vmatpush1.msra.mxu0 0.0
      %1026 = vmatprep.subr.mxu0 0.0
      %1027 = vmatpush1.msra.mxu0 0.0
      %1028 = vmatprep.subr.mxu0 0.0
      %1029 = vmatpush1.msra.mxu0 0.0
      %1030 = vmatprep.subr.mxu0 0.0
      %1031 = vmatpush1.msra.mxu0 0.0
      %1032 = vmatprep.subr.mxu0 0.0
      %1033 = vmatpush1.msra.mxu0 0.0
      %1034 = vmatprep.subr.mxu0 0.0
      %1035 = vmatpush1.msra.mxu0 0.0
      %1036 = vmatprep.subr.mxu0 0.0
      %1037 = vmatpush1.msra.mxu0 0.0
      %1038 = vmatprep.subr.mxu0 0.0
      %1039 = vmatpush1.msra.mxu0 0.0
      %1040 = vmatprep.subr.mxu0 0.0
      %1041 = vmatpush1.msra.mxu0 0.0
      %1042 = vmatprep.subr.mxu0 0.0
      %1043 = vmatpush1.msra.mxu0 0.0
      %1044 = vmatprep.subr.mxu0 0.0
      %1045 = vmatpush1.msra.mxu0 0.0
      %1046 = vmatprep.subr.mxu0 0.0
      %1047 = vmatpush1.msra.mxu0 0.0
      %1048 = vmatprep.subr.mxu0 0.0
      %1049 = vmatpush1.msra.mxu0 0.0
      %1050 = vmatprep.subr.mxu0 0.0
      %1051 = vmatpush1.msra.mxu0 0.0
      %1052 = vmatprep.subr.mxu0 0.0
      %1053 = vmatpush1.msra.mxu0 0.0
      %1054 = vmatprep.mubr.f32.mxu0 0.0
      %v1055 = vand.u32 %v792, 4294901760
      %v1056 = vsub.f32 %v792, %v1055
      %1057 = vmatmul.mubr.f32.gmra.mrb[0].mxu0 %v1056
      %v1058 = vpop.f32.mrb[0].mxu0
      %v1059 = vadd.f32 %v973, %v1058
      %v1060 = vpop.f32.mrb[0].mxu0
      %1061 = vmatprep.mubr.f32.mxu0 0.0
      %v1062 = vand.u32 %v795, 4294901760
      %v1063 = vsub.f32 %v795, %v1062
      %1064 = vmatmul.mubr.f32.gmra.mrb[0].mxu0 %v1063
      %v1065 = vpop.f32.mrb[0].mxu0
      %v1066 = vadd.f32 %v979, %v1065
      %v1067 = vpop.f32.mrb[0].mxu0
      %1068 = vmatprep.mubr.f32.mxu0 0.0
      %v1069 = vand.u32 %v798, 4294901760
      %v1070 = vsub.f32 %v798, %v1069
      %1071 = vmatmul.mubr.f32.gmra.mrb[0].mxu0 %v1070
      %v1072 = vpop.f32.mrb[0].mxu0
      %v1073 = vadd.f32 %v985, %v1072
      %v1074 = vpop.f32.mrb[0].mxu0
      %1075 = vdwg.mxu0
      %1076 = vmatprep.subr.mxu0 0.0
      %v1077 = vand.u32 %v802, 4294901760
      %1078 = vmatpush1.msra.mxu0 %v1077
      %1079 = vmatprep.subr.mxu0 0.0
      %1080 = vmatpush1.msra.mxu0 0.0
      %1081 = vmatprep.subr.mxu0 0.0
      %1082 = vmatpush1.msra.mxu0 0.0
      %1083 = vmatprep.subr.mxu0 0.0
      %1084 = vmatpush1.msra.mxu0 0.0
      %1085 = vmatprep.subr.mxu0 0.0
      %1086 = vmatpush1.msra.mxu0 0.0
      %1087 = vmatprep.subr.mxu0 0.0
      %1088 = vmatpush1.msra.mxu0 0.0
      %1089 = vmatprep.subr.mxu0 0.0
      %1090 = vmatpush1.msra.mxu0 0.0
      %1091 = vmatprep.subr.mxu0 0.0
      %1092 = vmatpush1.msra.mxu0 0.0
      %1093 = vmatprep.subr.mxu0 0.0
      %1094 = vmatpush1.msra.mxu0 0.0
      %1095 = vmatprep.subr.mxu0 0.0
      %1096 = vmatpush1.msra.mxu0 0.0
      %1097 = vmatprep.subr.mxu0 0.0
      %1098 = vmatpush1.msra.mxu0 0.0
      %1099 = vmatprep.subr.mxu0 0.0
      %1100 = vmatpush1.msra.mxu0 0.0
      %1101 = vmatprep.subr.mxu0 0.0
      %1102 = vmatpush1.msra.mxu0 0.0
      %1103 = vmatprep.subr.mxu0 0.0
      %1104 = vmatpush1.msra.mxu0 0.0
      %1105 = vmatprep.subr.mxu0 0.0
      %1106 = vmatpush1.msra.mxu0 0.0
      %1107 = vmatprep.subr.mxu0 0.0
      %1108 = vmatpush1.msra.mxu0 0.0
      %1109 = vmatprep.subr.mxu0 0.0
      %1110 = vmatpush1.msra.mxu0 0.0
      %1111 = vmatprep.subr.mxu0 0.0
      %1112 = vmatpush1.msra.mxu0 0.0
      %1113 = vmatprep.subr.mxu0 0.0
      %1114 = vmatpush1.msra.mxu0 0.0
      %1115 = vmatprep.subr.mxu0 0.0
      %1116 = vmatpush1.msra.mxu0 0.0
      %1117 = vmatprep.subr.mxu0 0.0
      %1118 = vmatpush1.msra.mxu0 0.0
      %1119 = vmatprep.subr.mxu0 0.0
      %1120 = vmatpush1.msra.mxu0 0.0
      %1121 = vmatprep.subr.mxu0 0.0
      %1122 = vmatpush1.msra.mxu0 0.0
      %1123 = vmatprep.subr.mxu0 0.0
      %1124 = vmatpush1.msra.mxu0 0.0
      %1125 = vmatprep.subr.mxu0 0.0
      %1126 = vmatpush1.msra.mxu0 0.0
      %1127 = vmatprep.subr.mxu0 0.0
      %1128 = vmatpush1.msra.mxu0 0.0
      %1129 = vmatprep.subr.mxu0 0.0
      %1130 = vmatpush1.msra.mxu0 0.0
      %1131 = vmatprep.subr.mxu0 0.0
      %1132 = vmatpush1.msra.mxu0 0.0
      %1133 = vmatprep.subr.mxu0 0.0
      %1134 = vmatpush1.msra.mxu0 0.0
      %1135 = vmatprep.subr.mxu0 0.0
      %1136 = vmatpush1.msra.mxu0 0.0
      %1137 = vmatprep.subr.mxu0 0.0
      %1138 = vmatpush1.msra.mxu0 0.0
      %1139 = vmatprep.subr.mxu0 0.0
      %1140 = vmatpush1.msra.mxu0 0.0
      %1141 = vmatprep.mubr.f32.mxu0 0.0
      %v1142 = vand.u32 %v792, 4294901760
      %v1143 = vsub.f32 %v792, %v1142
      %v1144 = vand.u32 %v1143, 4294901760
      %1145 = vmatmul.mubr.f32.gmra.mrb[0].mxu0 %v1144
      %v1146 = vpop.f32.mrb[0].mxu0
      %v1147 = vadd.f32 %v1059, %v1146
      %v1148 = vpop.f32.mrb[0].mxu0
      %1149 = vmatprep.mubr.f32.mxu0 0.0
      %v1150 = vand.u32 %v795, 4294901760
      %v1151 = vsub.f32 %v795, %v1150
      %v1152 = vand.u32 %v1151, 4294901760
      %1153 = vmatmul.mubr.f32.gmra.mrb[0].mxu0 %v1152
      %v1154 = vpop.f32.mrb[0].mxu0
      %v1155 = vadd.f32 %v1066, %v1154
      %v1156 = vpop.f32.mrb[0].mxu0
      %1157 = vmatprep.mubr.f32.mxu0 0.0
      %v1158 = vand.u32 %v798, 4294901760
      %v1159 = vsub.f32 %v798, %v1158
      %v1160 = vand.u32 %v1159, 4294901760
      %1161 = vmatmul.mubr.f32.gmra.mrb[0].mxu0 %v1160
      %v1162 = vpop.f32.mrb[0].mxu0
      %v1163 = vadd.f32 %v1073, %v1162
      %v1164 = vpop.f32.mrb[0].mxu0
      %1165 = vdwg.mxu0
      %1166 = vmatprep.subr.mxu0 0.0
      %v1167 = vand.u32 %v802, 4294901760
      %v1168 = vsub.f32 %v802, %v1167
      %v1169 = vand.u32 %v1168, 4294901760
      %1170 = vmatpush1.msra.mxu0 %v1169
      %1171 = vmatprep.subr.mxu0 0.0
      %1172 = vmatpush1.msra.mxu0 0.0
      %1173 = vmatprep.subr.mxu0 0.0
      %1174 = vmatpush1.msra.mxu0 0.0
      %1175 = vmatprep.subr.mxu0 0.0
      %1176 = vmatpush1.msra.mxu0 0.0
      %1177 = vmatprep.subr.mxu0 0.0
      %1178 = vmatpush1.msra.mxu0 0.0
      %1179 = vmatprep.subr.mxu0 0.0
      %1180 = vmatpush1.msra.mxu0 0.0
      %1181 = vmatprep.subr.mxu0 0.0
      %1182 = vmatpush1.msra.mxu0 0.0
      %1183 = vmatprep.subr.mxu0 0.0
      %1184 = vmatpush1.msra.mxu0 0.0
      %1185 = vmatprep.subr.mxu0 0.0
      %1186 = vmatpush1.msra.mxu0 0.0
      %1187 = vmatprep.subr.mxu0 0.0
      %1188 = vmatpush1.msra.mxu0 0.0
      %1189 = vmatprep.subr.mxu0 0.0
      %1190 = vmatpush1.msra.mxu0 0.0
      %1191 = vmatprep.subr.mxu0 0.0
      %1192 = vmatpush1.msra.mxu0 0.0
      %1193 = vmatprep.subr.mxu0 0.0
      %1194 = vmatpush1.msra.mxu0 0.0
      %1195 = vmatprep.subr.mxu0 0.0
      %1196 = vmatpush1.msra.mxu0 0.0
      %1197 = vmatprep.subr.mxu0 0.0
      %1198 = vmatpush1.msra.mxu0 0.0
      %1199 = vmatprep.subr.mxu0 0.0
      %1200 = vmatpush1.msra.mxu0 0.0
      %1201 = vmatprep.subr.mxu0 0.0
      %1202 = vmatpush1.msra.mxu0 0.0
      %1203 = vmatprep.subr.mxu0 0.0
      %1204 = vmatpush1.msra.mxu0 0.0
      %1205 = vmatprep.subr.mxu0 0.0
      %1206 = vmatpush1.msra.mxu0 0.0
      %1207 = vmatprep.subr.mxu0 0.0
      %1208 = vmatpush1.msra.mxu0 0.0
      %1209 = vmatprep.subr.mxu0 0.0
      %1210 = vmatpush1.msra.mxu0 0.0
      %1211 = vmatprep.subr.mxu0 0.0
      %1212 = vmatpush1.msra.mxu0 0.0
      %1213 = vmatprep.subr.mxu0 0.0
      %1214 = vmatpush1.msra.mxu0 0.0
      %1215 = vmatprep.subr.mxu0 0.0
      %1216 = vmatpush1.msra.mxu0 0.0
      %1217 = vmatprep.subr.mxu0 0.0
      %1218 = vmatpush1.msra.mxu0 0.0
      %1219 = vmatprep.subr.mxu0 0.0
      %1220 = vmatpush1.msra.mxu0 0.0
      %1221 = vmatprep.subr.mxu0 0.0
      %1222 = vmatpush1.msra.mxu0 0.0
      %1223 = vmatprep.subr.mxu0 0.0
      %1224 = vmatpush1.msra.mxu0 0.0
      %1225 = vmatprep.subr.mxu0 0.0
      %1226 = vmatpush1.msra.mxu0 0.0
      %1227 = vmatprep.subr.mxu0 0.0
      %1228 = vmatpush1.msra.mxu0 0.0
      %1229 = vmatprep.subr.mxu0 0.0
      %1230 = vmatpush1.msra.mxu0 0.0
      %1231 = vmatprep.subr.mxu0 0.0
      %1232 = vmatpush1.msra.mxu0 0.0
      %1233 = vmatprep.mubr.f32.mxu0 0.0
      %v1234 = vand.u32 %v792, 4294901760
      %1235 = vmatmul.mubr.f32.gmra.mrb[0].mxu0 %v1234
      %v1236 = vpop.f32.mrb[0].mxu0
      %v1237 = vadd.f32 %v1147, %v1236
      %v1238 = vpop.f32.mrb[0].mxu0
      %1239 = vmatprep.mubr.f32.mxu0 0.0
      %v1240 = vand.u32 %v795, 4294901760
      %1241 = vmatmul.mubr.f32.gmra.mrb[0].mxu0 %v1240
      %v1242 = vpop.f32.mrb[0].mxu0
      %v1243 = vadd.f32 %v1155, %v1242
      %v1244 = vpop.f32.mrb[0].mxu0
      %1245 = vmatprep.mubr.f32.mxu0 0.0
      %v1246 = vand.u32 %v798, 4294901760
      %1247 = vmatmul.mubr.f32.gmra.mrb[0].mxu0 %v1246
      %v1248 = vpop.f32.mrb[0].mxu0
      %v1249 = vadd.f32 %v1163, %v1248
      %v1250 = vpop.f32.mrb[0].mxu0
      %1251 = vdwg.mxu0
      %1252 = vmatprep.subr.mxu0 0.0
      %v1253 = vand.u32 %v802, 4294901760
      %1254 = vmatpush1.msra.mxu0 %v1253
      %1255 = vmatprep.subr.mxu0 0.0
      %1256 = vmatpush1.msra.mxu0 0.0
      %1257 = vmatprep.subr.mxu0 0.0
      %1258 = vmatpush1.msra.mxu0 0.0
      %1259 = vmatprep.subr.mxu0 0.0
      %1260 = vmatpush1.msra.mxu0 0.0
      %1261 = vmatprep.subr.mxu0 0.0
      %1262 = vmatpush1.msra.mxu0 0.0
      %1263 = vmatprep.subr.mxu0 0.0
      %1264 = vmatpush1.msra.mxu0 0.0
      %1265 = vmatprep.subr.mxu0 0.0
      %1266 = vmatpush1.msra.mxu0 0.0
      %1267 = vmatprep.subr.mxu0 0.0
      %1268 = vmatpush1.msra.mxu0 0.0
      %1269 = vmatprep.subr.mxu0 0.0
      %1270 = vmatpush1.msra.mxu0 0.0
      %1271 = vmatprep.subr.mxu0 0.0
      %1272 = vmatpush1.msra.mxu0 0.0
      %1273 = vmatprep.subr.mxu0 0.0
      %1274 = vmatpush1.msra.mxu0 0.0
      %1275 = vmatprep.subr.mxu0 0.0
      %1276 = vmatpush1.msra.mxu0 0.0
      %1277 = vmatprep.subr.mxu0 0.0
      %1278 = vmatpush1.msra.mxu0 0.0
      %1279 = vmatprep.subr.mxu0 0.0
      %1280 = vmatpush1.msra.mxu0 0.0
      %1281 = vmatprep.subr.mxu0 0.0
      %1282 = vmatpush1.msra.mxu0 0.0
      %1283 = vmatprep.subr.mxu0 0.0
      %1284 = vmatpush1.msra.mxu0 0.0
      %1285 = vmatprep.subr.mxu0 0.0
      %1286 = vmatpush1.msra.mxu0 0.0
      %1287 = vmatprep.subr.mxu0 0.0
      %1288 = vmatpush1.msra.mxu0 0.0
      %1289 = vmatprep.subr.mxu0 0.0
      %1290 = vmatpush1.msra.mxu0 0.0
      %1291 = vmatprep.subr.mxu0 0.0
      %1292 = vmatpush1.msra.mxu0 0.0
      %1293 = vmatprep.subr.mxu0 0.0
      %1294 = vmatpush1.msra.mxu0 0.0
      %1295 = vmatprep.subr.mxu0 0.0
      %1296 = vmatpush1.msra.mxu0 0.0
      %1297 = vmatprep.subr.mxu0 0.0
      %1298 = vmatpush1.msra.mxu0 0.0
      %1299 = vmatprep.subr.mxu0 0.0
      %1300 = vmatpush1.msra.mxu0 0.0
      %1301 = vmatprep.subr.mxu0 0.0
      %1302 = vmatpush1.msra.mxu0 0.0
      %1303 = vmatprep.subr.mxu0 0.0
      %1304 = vmatpush1.msra.mxu0 0.0
      %1305 = vmatprep.subr.mxu0 0.0
      %1306 = vmatpush1.msra.mxu0 0.0
      %1307 = vmatprep.subr.mxu0 0.0
      %1308 = vmatpush1.msra.mxu0 0.0
      %1309 = vmatprep.subr.mxu0 0.0
      %1310 = vmatpush1.msra.mxu0 0.0
      %1311 = vmatprep.subr.mxu0 0.0
      %1312 = vmatpush1.msra.mxu0 0.0
      %1313 = vmatprep.subr.mxu0 0.0
      %1314 = vmatpush1.msra.mxu0 0.0
      %1315 = vmatprep.subr.mxu0 0.0
      %1316 = vmatpush1.msra.mxu0 0.0
      %1317 = vmatprep.mubr.f32.mxu0 0.0
      %v1318 = vand.u32 %v792, 4294901760
      %1319 = vmatmul.mubr.f32.gmra.mrb[0].mxu0 %v1318
      %v1320 = vpop.f32.mrb[0].mxu0
      %v1321 = vadd.f32 %v1237, %v1320
      %v1322 = vpop.f32.mrb[0].mxu0
      %1323 = vmatprep.mubr.f32.mxu0 0.0
      %v1324 = vand.u32 %v795, 4294901760
      %1325 = vmatmul.mubr.f32.gmra.mrb[0].mxu0 %v1324
      %v1326 = vpop.f32.mrb[0].mxu0
      %v1327 = vadd.f32 %v1243, %v1326
      %v1328 = vpop.f32.mrb[0].mxu0
      %1329 = vmatprep.mubr.f32.mxu0 0.0
      %v1330 = vand.u32 %v798, 4294901760
      %1331 = vmatmul.mubr.f32.gmra.mrb[0].mxu0 %v1330
      %v1332 = vpop.f32.mrb[0].mxu0
      %v1333 = vadd.f32 %v1249, %v1332
      %v1334 = vpop.f32.mrb[0].mxu0
      %1335 = vdwg.mxu0
      %v1336 = vsub.f32 %v141, %v1321
      %v1337 = vsub.f32 %v142, %v1327
      %v1338 = vsub.f32 %v143, %v1333
      %v1339 = vmul.f32 %v1336, %v1336
      %v1340 = vmul.f32 %v1337, %v1337
      %v1341 = vmul.f32 %v1338, %v1338
      %v1343 = vsel %vm134, %v1339, 0
      %v1346 = vsel %vm134, %v1340, 0
      %v1349 = vsel %vm134, %v1341, 0
      %1351 = vmatprep.subr.mxu0 0.0
      %v1352 = vand.u32 %v146, 4294901760
      %1353 = vmatpush1.msra.mxu0 %v1352
      %1354 = vmatprep.subr.mxu0 0.0
      %v1355 = vand.u32 %v147, 4294901760
      %1356 = vmatpush1.msra.mxu0 %v1355
      %1357 = vmatprep.subr.mxu0 0.0
      %v1358 = vand.u32 %v148, 4294901760
      %1359 = vmatpush1.msra.mxu0 %v1358
      %1360 = vmatprep.subr.mxu0 0.0
      %v1361 = vand.u32 %v149, 4294901760
      %1362 = vmatpush1.msra.mxu0 %v1361
      %1363 = vmatprep.subr.mxu0 0.0
      %v1364 = vand.u32 %v150, 4294901760
      %1365 = vmatpush1.msra.mxu0 %v1364
      %1366 = vmatprep.subr.mxu0 0.0
      %v1367 = vand.u32 %v151, 4294901760
      %1368 = vmatpush1.msra.mxu0 %v1367
      %1369 = vmatprep.subr.mxu0 0.0
      %v1370 = vand.u32 %v152, 4294901760
      %1371 = vmatpush1.msra.mxu0 %v1370
      %1372 = vmatprep.subr.mxu0 0.0
      %v1373 = vand.u32 %v153, 4294901760
      %1374 = vmatpush1.msra.mxu0 %v1373
      %1375 = vmatprep.subr.mxu0 0.0
      %1376 = vmatpush1.msra.mxu0 0.0
      %1377 = vmatprep.subr.mxu0 0.0
      %1378 = vmatpush1.msra.mxu0 0.0
      %1379 = vmatprep.subr.mxu0 0.0
      %1380 = vmatpush1.msra.mxu0 0.0
      %1381 = vmatprep.subr.mxu0 0.0
      %1382 = vmatpush1.msra.mxu0 0.0
      %1383 = vmatprep.subr.mxu0 0.0
      %1384 = vmatpush1.msra.mxu0 0.0
      %1385 = vmatprep.subr.mxu0 0.0
      %1386 = vmatpush1.msra.mxu0 0.0
      %1387 = vmatprep.subr.mxu0 0.0
      %1388 = vmatpush1.msra.mxu0 0.0
      %1389 = vmatprep.subr.mxu0 0.0
      %1390 = vmatpush1.msra.mxu0 0.0
      %1391 = vmatprep.subr.mxu0 0.0
      %1392 = vmatpush1.msra.mxu0 0.0
      %1393 = vmatprep.subr.mxu0 0.0
      %1394 = vmatpush1.msra.mxu0 0.0
      %1395 = vmatprep.subr.mxu0 0.0
      %1396 = vmatpush1.msra.mxu0 0.0
      %1397 = vmatprep.subr.mxu0 0.0
      %1398 = vmatpush1.msra.mxu0 0.0
      %1399 = vmatprep.subr.mxu0 0.0
      %1400 = vmatpush1.msra.mxu0 0.0
      %1401 = vmatprep.subr.mxu0 0.0
      %1402 = vmatpush1.msra.mxu0 0.0
      %1403 = vmatprep.subr.mxu0 0.0
      %1404 = vmatpush1.msra.mxu0 0.0
      %1405 = vmatprep.subr.mxu0 0.0
      %1406 = vmatpush1.msra.mxu0 0.0
      %1407 = vmatprep.subr.mxu0 0.0
      %1408 = vmatpush1.msra.mxu0 0.0
      %1409 = vmatprep.subr.mxu0 0.0
      %1410 = vmatpush1.msra.mxu0 0.0
      %1411 = vmatprep.subr.mxu0 0.0
      %1412 = vmatpush1.msra.mxu0 0.0
      %1413 = vmatprep.subr.mxu0 0.0
      %1414 = vmatpush1.msra.mxu0 0.0
      %1415 = vmatprep.subr.mxu0 0.0
      %1416 = vmatpush1.msra.mxu0 0.0
      %1417 = vmatprep.subr.mxu0 0.0
      %1418 = vmatpush1.msra.mxu0 0.0
      %1419 = vmatprep.subr.mxu0 0.0
      %1420 = vmatpush1.msra.mxu0 0.0
      %1421 = vmatprep.subr.mxu0 0.0
      %1422 = vmatpush1.msra.mxu0 0.0
      %1423 = vmatprep.mubr.f32.mxu0 0.0
      %v1424 = vand.u32 %v1343, 4294901760
      %v1425 = vsub.f32 %v1343, %v1424
      %v1426 = vand.u32 %v1425, 4294901760
      %v1427 = vsub.f32 %v1425, %v1426
      %v1428 = vand.u32 %v1427, 4294901760
      %1429 = vmatmul.mubr.f32.gmra.mrb[0].mxu0 %v1428
      %v1430 = vpop.f32.mrb[0].mxu0
      %v1431 = vadd.f32 0.0, %v1430
      %v1432 = vpop.f32.mrb[0].mxu0
      %1433 = vmatprep.mubr.f32.mxu0 0.0
      %v1434 = vand.u32 %v1346, 4294901760
      %v1435 = vsub.f32 %v1346, %v1434
      %v1436 = vand.u32 %v1435, 4294901760
      %v1437 = vsub.f32 %v1435, %v1436
      %v1438 = vand.u32 %v1437, 4294901760
      %1439 = vmatmul.mubr.f32.gmra.mrb[0].mxu0 %v1438
      %v1440 = vpop.f32.mrb[0].mxu0
      %v1441 = vadd.f32 0.0, %v1440
      %v1442 = vpop.f32.mrb[0].mxu0
      %1443 = vmatprep.mubr.f32.mxu0 0.0
      %v1444 = vand.u32 %v1349, 4294901760
      %v1445 = vsub.f32 %v1349, %v1444
      %v1446 = vand.u32 %v1445, 4294901760
      %v1447 = vsub.f32 %v1445, %v1446
      %v1448 = vand.u32 %v1447, 4294901760
      %1449 = vmatmul.mubr.f32.gmra.mrb[0].mxu0 %v1448
      %v1450 = vpop.f32.mrb[0].mxu0
      %v1451 = vadd.f32 0.0, %v1450
      %v1452 = vpop.f32.mrb[0].mxu0
      %1453 = vdwg.mxu0
      %1454 = vmatprep.subr.mxu0 0.0
      %v1455 = vand.u32 %v146, 4294901760
      %v1456 = vsub.f32 %v146, %v1455
      %v1457 = vand.u32 %v1456, 4294901760
      %v1458 = vsub.f32 %v1456, %v1457
      %v1459 = vand.u32 %v1458, 4294901760
      %1460 = vmatpush1.msra.mxu0 %v1459
      %1461 = vmatprep.subr.mxu0 0.0
      %v1462 = vand.u32 %v147, 4294901760
      %v1463 = vsub.f32 %v147, %v1462
      %v1464 = vand.u32 %v1463, 4294901760
      %v1465 = vsub.f32 %v1463, %v1464
      %v1466 = vand.u32 %v1465, 4294901760
      %1467 = vmatpush1.msra.mxu0 %v1466
      %1468 = vmatprep.subr.mxu0 0.0
      %v1469 = vand.u32 %v148, 4294901760
      %v1470 = vsub.f32 %v148, %v1469
      %v1471 = vand.u32 %v1470, 4294901760
      %v1472 = vsub.f32 %v1470, %v1471
      %v1473 = vand.u32 %v1472, 4294901760
      %1474 = vmatpush1.msra.mxu0 %v1473
      %1475 = vmatprep.subr.mxu0 0.0
      %v1476 = vand.u32 %v149, 4294901760
      %v1477 = vsub.f32 %v149, %v1476
      %v1478 = vand.u32 %v1477, 4294901760
      %v1479 = vsub.f32 %v1477, %v1478
      %v1480 = vand.u32 %v1479, 4294901760
      %1481 = vmatpush1.msra.mxu0 %v1480
      %1482 = vmatprep.subr.mxu0 0.0
      %v1483 = vand.u32 %v150, 4294901760
      %v1484 = vsub.f32 %v150, %v1483
      %v1485 = vand.u32 %v1484, 4294901760
      %v1486 = vsub.f32 %v1484, %v1485
      %v1487 = vand.u32 %v1486, 4294901760
      %1488 = vmatpush1.msra.mxu0 %v1487
      %1489 = vmatprep.subr.mxu0 0.0
      %v1490 = vand.u32 %v151, 4294901760
      %v1491 = vsub.f32 %v151, %v1490
      %v1492 = vand.u32 %v1491, 4294901760
      %v1493 = vsub.f32 %v1491, %v1492
      %v1494 = vand.u32 %v1493, 4294901760
      %1495 = vmatpush1.msra.mxu0 %v1494
      %1496 = vmatprep.subr.mxu0 0.0
      %v1497 = vand.u32 %v152, 4294901760
      %v1498 = vsub.f32 %v152, %v1497
      %v1499 = vand.u32 %v1498, 4294901760
      %v1500 = vsub.f32 %v1498, %v1499
      %v1501 = vand.u32 %v1500, 4294901760
      %1502 = vmatpush1.msra.mxu0 %v1501
      %1503 = vmatprep.subr.mxu0 0.0
      %v1504 = vand.u32 %v153, 4294901760
      %v1505 = vsub.f32 %v153, %v1504
      %v1506 = vand.u32 %v1505, 4294901760
      %v1507 = vsub.f32 %v1505, %v1506
      %v1508 = vand.u32 %v1507, 4294901760
      %1509 = vmatpush1.msra.mxu0 %v1508
      %1510 = vmatprep.subr.mxu0 0.0
      %1511 = vmatpush1.msra.mxu0 0.0
      %1512 = vmatprep.subr.mxu0 0.0
      %1513 = vmatpush1.msra.mxu0 0.0
      %1514 = vmatprep.subr.mxu0 0.0
      %1515 = vmatpush1.msra.mxu0 0.0
      %1516 = vmatprep.subr.mxu0 0.0
      %1517 = vmatpush1.msra.mxu0 0.0
      %1518 = vmatprep.subr.mxu0 0.0
      %1519 = vmatpush1.msra.mxu0 0.0
      %1520 = vmatprep.subr.mxu0 0.0
      %1521 = vmatpush1.msra.mxu0 0.0
      %1522 = vmatprep.subr.mxu0 0.0
      %1523 = vmatpush1.msra.mxu0 0.0
      %1524 = vmatprep.subr.mxu0 0.0
      %1525 = vmatpush1.msra.mxu0 0.0
      %1526 = vmatprep.subr.mxu0 0.0
      %1527 = vmatpush1.msra.mxu0 0.0
      %1528 = vmatprep.subr.mxu0 0.0
      %1529 = vmatpush1.msra.mxu0 0.0
      %1530 = vmatprep.subr.mxu0 0.0
      %1531 = vmatpush1.msra.mxu0 0.0
      %1532 = vmatprep.subr.mxu0 0.0
      %1533 = vmatpush1.msra.mxu0 0.0
      %1534 = vmatprep.subr.mxu0 0.0
      %1535 = vmatpush1.msra.mxu0 0.0
      %1536 = vmatprep.subr.mxu0 0.0
      %1537 = vmatpush1.msra.mxu0 0.0
      %1538 = vmatprep.subr.mxu0 0.0
      %1539 = vmatpush1.msra.mxu0 0.0
      %1540 = vmatprep.subr.mxu0 0.0
      %1541 = vmatpush1.msra.mxu0 0.0
      %1542 = vmatprep.subr.mxu0 0.0
      %1543 = vmatpush1.msra.mxu0 0.0
      %1544 = vmatprep.subr.mxu0 0.0
      %1545 = vmatpush1.msra.mxu0 0.0
      %1546 = vmatprep.subr.mxu0 0.0
      %1547 = vmatpush1.msra.mxu0 0.0
      %1548 = vmatprep.subr.mxu0 0.0
      %1549 = vmatpush1.msra.mxu0 0.0
      %1550 = vmatprep.subr.mxu0 0.0
      %1551 = vmatpush1.msra.mxu0 0.0
      %1552 = vmatprep.subr.mxu0 0.0
      %1553 = vmatpush1.msra.mxu0 0.0
      %1554 = vmatprep.subr.mxu0 0.0
      %1555 = vmatpush1.msra.mxu0 0.0
      %1556 = vmatprep.subr.mxu0 0.0
      %1557 = vmatpush1.msra.mxu0 0.0
      %1558 = vmatprep.mubr.f32.mxu0 0.0
      %v1559 = vand.u32 %v1343, 4294901760
      %1560 = vmatmul.mubr.f32.gmra.mrb[0].mxu0 %v1559
      %v1561 = vpop.f32.mrb[0].mxu0
      %v1562 = vadd.f32 %v1431, %v1561
      %v1563 = vpop.f32.mrb[0].mxu0
      %1564 = vmatprep.mubr.f32.mxu0 0.0
      %v1565 = vand.u32 %v1346, 4294901760
      %1566 = vmatmul.mubr.f32.gmra.mrb[0].mxu0 %v1565
      %v1567 = vpop.f32.mrb[0].mxu0
      %v1568 = vadd.f32 %v1441, %v1567
      %v1569 = vpop.f32.mrb[0].mxu0
      %1570 = vmatprep.mubr.f32.mxu0 0.0
      %v1571 = vand.u32 %v1349, 4294901760
      %1572 = vmatmul.mubr.f32.gmra.mrb[0].mxu0 %v1571
      %v1573 = vpop.f32.mrb[0].mxu0
      %v1574 = vadd.f32 %v1451, %v1573
      %v1575 = vpop.f32.mrb[0].mxu0
      %1576 = vdwg.mxu0
      %1577 = vmatprep.subr.mxu0 0.0
      %v1578 = vand.u32 %v146, 4294901760
      %v1579 = vsub.f32 %v146, %v1578
      %1580 = vmatpush1.msra.mxu0 %v1579
      %1581 = vmatprep.subr.mxu0 0.0
      %v1582 = vand.u32 %v147, 4294901760
      %v1583 = vsub.f32 %v147, %v1582
      %1584 = vmatpush1.msra.mxu0 %v1583
      %1585 = vmatprep.subr.mxu0 0.0
      %v1586 = vand.u32 %v148, 4294901760
      %v1587 = vsub.f32 %v148, %v1586
      %1588 = vmatpush1.msra.mxu0 %v1587
      %1589 = vmatprep.subr.mxu0 0.0
      %v1590 = vand.u32 %v149, 4294901760
      %v1591 = vsub.f32 %v149, %v1590
      %1592 = vmatpush1.msra.mxu0 %v1591
      %1593 = vmatprep.subr.mxu0 0.0
      %v1594 = vand.u32 %v150, 4294901760
      %v1595 = vsub.f32 %v150, %v1594
      %1596 = vmatpush1.msra.mxu0 %v1595
      %1597 = vmatprep.subr.mxu0 0.0
      %v1598 = vand.u32 %v151, 4294901760
      %v1599 = vsub.f32 %v151, %v1598
      %1600 = vmatpush1.msra.mxu0 %v1599
      %1601 = vmatprep.subr.mxu0 0.0
      %v1602 = vand.u32 %v152, 4294901760
      %v1603 = vsub.f32 %v152, %v1602
      %1604 = vmatpush1.msra.mxu0 %v1603
      %1605 = vmatprep.subr.mxu0 0.0
      %v1606 = vand.u32 %v153, 4294901760
      %v1607 = vsub.f32 %v153, %v1606
      %1608 = vmatpush1.msra.mxu0 %v1607
      %1609 = vmatprep.subr.mxu0 0.0
      %1610 = vmatpush1.msra.mxu0 0.0
      %1611 = vmatprep.subr.mxu0 0.0
      %1612 = vmatpush1.msra.mxu0 0.0
      %1613 = vmatprep.subr.mxu0 0.0
      %1614 = vmatpush1.msra.mxu0 0.0
      %1615 = vmatprep.subr.mxu0 0.0
      %1616 = vmatpush1.msra.mxu0 0.0
      %1617 = vmatprep.subr.mxu0 0.0
      %1618 = vmatpush1.msra.mxu0 0.0
      %1619 = vmatprep.subr.mxu0 0.0
      %1620 = vmatpush1.msra.mxu0 0.0
      %1621 = vmatprep.subr.mxu0 0.0
      %1622 = vmatpush1.msra.mxu0 0.0
      %1623 = vmatprep.subr.mxu0 0.0
      %1624 = vmatpush1.msra.mxu0 0.0
      %1625 = vmatprep.subr.mxu0 0.0
      %1626 = vmatpush1.msra.mxu0 0.0
      %1627 = vmatprep.subr.mxu0 0.0
      %1628 = vmatpush1.msra.mxu0 0.0
      %1629 = vmatprep.subr.mxu0 0.0
      %1630 = vmatpush1.msra.mxu0 0.0
      %1631 = vmatprep.subr.mxu0 0.0
      %1632 = vmatpush1.msra.mxu0 0.0
      %1633 = vmatprep.subr.mxu0 0.0
      %1634 = vmatpush1.msra.mxu0 0.0
      %1635 = vmatprep.subr.mxu0 0.0
      %1636 = vmatpush1.msra.mxu0 0.0
      %1637 = vmatprep.subr.mxu0 0.0
      %1638 = vmatpush1.msra.mxu0 0.0
      %1639 = vmatprep.subr.mxu0 0.0
      %1640 = vmatpush1.msra.mxu0 0.0
      %1641 = vmatprep.subr.mxu0 0.0
      %1642 = vmatpush1.msra.mxu0 0.0
      %1643 = vmatprep.subr.mxu0 0.0
      %1644 = vmatpush1.msra.mxu0 0.0
      %1645 = vmatprep.subr.mxu0 0.0
      %1646 = vmatpush1.msra.mxu0 0.0
      %1647 = vmatprep.subr.mxu0 0.0
      %1648 = vmatpush1.msra.mxu0 0.0
      %1649 = vmatprep.subr.mxu0 0.0
      %1650 = vmatpush1.msra.mxu0 0.0
      %1651 = vmatprep.subr.mxu0 0.0
      %1652 = vmatpush1.msra.mxu0 0.0
      %1653 = vmatprep.subr.mxu0 0.0
      %1654 = vmatpush1.msra.mxu0 0.0
      %1655 = vmatprep.subr.mxu0 0.0
      %1656 = vmatpush1.msra.mxu0 0.0
      %1657 = vmatprep.mubr.f32.mxu0 0.0
      %v1658 = vand.u32 %v1343, 4294901760
      %v1659 = vsub.f32 %v1343, %v1658
      %1660 = vmatmul.mubr.f32.gmra.mrb[0].mxu0 %v1659
      %v1661 = vpop.f32.mrb[0].mxu0
      %v1662 = vadd.f32 %v1562, %v1661
      %v1663 = vpop.f32.mrb[0].mxu0
      %1664 = vmatprep.mubr.f32.mxu0 0.0
      %v1665 = vand.u32 %v1346, 4294901760
      %v1666 = vsub.f32 %v1346, %v1665
      %1667 = vmatmul.mubr.f32.gmra.mrb[0].mxu0 %v1666
      %v1668 = vpop.f32.mrb[0].mxu0
      %v1669 = vadd.f32 %v1568, %v1668
      %v1670 = vpop.f32.mrb[0].mxu0
      %1671 = vmatprep.mubr.f32.mxu0 0.0
      %v1672 = vand.u32 %v1349, 4294901760
      %v1673 = vsub.f32 %v1349, %v1672
      %1674 = vmatmul.mubr.f32.gmra.mrb[0].mxu0 %v1673
      %v1675 = vpop.f32.mrb[0].mxu0
      %v1676 = vadd.f32 %v1574, %v1675
      %v1677 = vpop.f32.mrb[0].mxu0
      %1678 = vdwg.mxu0
      %1679 = vmatprep.subr.mxu0 0.0
      %v1680 = vand.u32 %v146, 4294901760
      %1681 = vmatpush1.msra.mxu0 %v1680
      %1682 = vmatprep.subr.mxu0 0.0
      %v1683 = vand.u32 %v147, 4294901760
      %1684 = vmatpush1.msra.mxu0 %v1683
      %1685 = vmatprep.subr.mxu0 0.0
      %v1686 = vand.u32 %v148, 4294901760
      %1687 = vmatpush1.msra.mxu0 %v1686
      %1688 = vmatprep.subr.mxu0 0.0
      %v1689 = vand.u32 %v149, 4294901760
      %1690 = vmatpush1.msra.mxu0 %v1689
      %1691 = vmatprep.subr.mxu0 0.0
      %v1692 = vand.u32 %v150, 4294901760
      %1693 = vmatpush1.msra.mxu0 %v1692
      %1694 = vmatprep.subr.mxu0 0.0
      %v1695 = vand.u32 %v151, 4294901760
      %1696 = vmatpush1.msra.mxu0 %v1695
      %1697 = vmatprep.subr.mxu0 0.0
      %v1698 = vand.u32 %v152, 4294901760
      %1699 = vmatpush1.msra.mxu0 %v1698
      %1700 = vmatprep.subr.mxu0 0.0
      %v1701 = vand.u32 %v153, 4294901760
      %1702 = vmatpush1.msra.mxu0 %v1701
      %1703 = vmatprep.subr.mxu0 0.0
      %1704 = vmatpush1.msra.mxu0 0.0
      %1705 = vmatprep.subr.mxu0 0.0
      %1706 = vmatpush1.msra.mxu0 0.0
      %1707 = vmatprep.subr.mxu0 0.0
      %1708 = vmatpush1.msra.mxu0 0.0
      %1709 = vmatprep.subr.mxu0 0.0
      %1710 = vmatpush1.msra.mxu0 0.0
      %1711 = vmatprep.subr.mxu0 0.0
      %1712 = vmatpush1.msra.mxu0 0.0
      %1713 = vmatprep.subr.mxu0 0.0
      %1714 = vmatpush1.msra.mxu0 0.0
      %1715 = vmatprep.subr.mxu0 0.0
      %1716 = vmatpush1.msra.mxu0 0.0
      %1717 = vmatprep.subr.mxu0 0.0
      %1718 = vmatpush1.msra.mxu0 0.0
      %1719 = vmatprep.subr.mxu0 0.0
      %1720 = vmatpush1.msra.mxu0 0.0
      %1721 = vmatprep.subr.mxu0 0.0
      %1722 = vmatpush1.msra.mxu0 0.0
      %1723 = vmatprep.subr.mxu0 0.0
      %1724 = vmatpush1.msra.mxu0 0.0
      %1725 = vmatprep.subr.mxu0 0.0
      %1726 = vmatpush1.msra.mxu0 0.0
      %1727 = vmatprep.subr.mxu0 0.0
      %1728 = vmatpush1.msra.mxu0 0.0
      %1729 = vmatprep.subr.mxu0 0.0
      %1730 = vmatpush1.msra.mxu0 0.0
      %1731 = vmatprep.subr.mxu0 0.0
      %1732 = vmatpush1.msra.mxu0 0.0
      %1733 = vmatprep.subr.mxu0 0.0
      %1734 = vmatpush1.msra.mxu0 0.0
      %1735 = vmatprep.subr.mxu0 0.0
      %1736 = vmatpush1.msra.mxu0 0.0
      %1737 = vmatprep.subr.mxu0 0.0
      %1738 = vmatpush1.msra.mxu0 0.0
      %1739 = vmatprep.subr.mxu0 0.0
      %1740 = vmatpush1.msra.mxu0 0.0
      %1741 = vmatprep.subr.mxu0 0.0
      %1742 = vmatpush1.msra.mxu0 0.0
      %1743 = vmatprep.subr.mxu0 0.0
      %1744 = vmatpush1.msra.mxu0 0.0
      %1745 = vmatprep.subr.mxu0 0.0
      %1746 = vmatpush1.msra.mxu0 0.0
      %1747 = vmatprep.subr.mxu0 0.0
      %1748 = vmatpush1.msra.mxu0 0.0
      %1749 = vmatprep.subr.mxu0 0.0
      %1750 = vmatpush1.msra.mxu0 0.0
      %1751 = vmatprep.mubr.f32.mxu0 0.0
      %v1752 = vand.u32 %v1343, 4294901760
      %v1753 = vsub.f32 %v1343, %v1752
      %v1754 = vand.u32 %v1753, 4294901760
      %1755 = vmatmul.mubr.f32.gmra.mrb[0].mxu0 %v1754
      %v1756 = vpop.f32.mrb[0].mxu0
      %v1757 = vadd.f32 %v1662, %v1756
      %v1758 = vpop.f32.mrb[0].mxu0
      %1759 = vmatprep.mubr.f32.mxu0 0.0
      %v1760 = vand.u32 %v1346, 4294901760
      %v1761 = vsub.f32 %v1346, %v1760
      %v1762 = vand.u32 %v1761, 4294901760
      %1763 = vmatmul.mubr.f32.gmra.mrb[0].mxu0 %v1762
      %v1764 = vpop.f32.mrb[0].mxu0
      %v1765 = vadd.f32 %v1669, %v1764
      %v1766 = vpop.f32.mrb[0].mxu0
      %1767 = vmatprep.mubr.f32.mxu0 0.0
      %v1768 = vand.u32 %v1349, 4294901760
      %v1769 = vsub.f32 %v1349, %v1768
      %v1770 = vand.u32 %v1769, 4294901760
      %1771 = vmatmul.mubr.f32.gmra.mrb[0].mxu0 %v1770
      %v1772 = vpop.f32.mrb[0].mxu0
      %v1773 = vadd.f32 %v1676, %v1772
      %v1774 = vpop.f32.mrb[0].mxu0
      %1775 = vdwg.mxu0
      %1776 = vmatprep.subr.mxu0 0.0
      %v1777 = vand.u32 %v146, 4294901760
      %v1778 = vsub.f32 %v146, %v1777
      %v1779 = vand.u32 %v1778, 4294901760
      %1780 = vmatpush1.msra.mxu0 %v1779
      %1781 = vmatprep.subr.mxu0 0.0
      %v1782 = vand.u32 %v147, 4294901760
      %v1783 = vsub.f32 %v147, %v1782
      %v1784 = vand.u32 %v1783, 4294901760
      %1785 = vmatpush1.msra.mxu0 %v1784
      %1786 = vmatprep.subr.mxu0 0.0
      %v1787 = vand.u32 %v148, 4294901760
      %v1788 = vsub.f32 %v148, %v1787
      %v1789 = vand.u32 %v1788, 4294901760
      %1790 = vmatpush1.msra.mxu0 %v1789
      %1791 = vmatprep.subr.mxu0 0.0
      %v1792 = vand.u32 %v149, 4294901760
      %v1793 = vsub.f32 %v149, %v1792
      %v1794 = vand.u32 %v1793, 4294901760
      %1795 = vmatpush1.msra.mxu0 %v1794
      %1796 = vmatprep.subr.mxu0 0.0
      %v1797 = vand.u32 %v150, 4294901760
      %v1798 = vsub.f32 %v150, %v1797
      %v1799 = vand.u32 %v1798, 4294901760
      %1800 = vmatpush1.msra.mxu0 %v1799
      %1801 = vmatprep.subr.mxu0 0.0
      %v1802 = vand.u32 %v151, 4294901760
      %v1803 = vsub.f32 %v151, %v1802
      %v1804 = vand.u32 %v1803, 4294901760
      %1805 = vmatpush1.msra.mxu0 %v1804
      %1806 = vmatprep.subr.mxu0 0.0
      %v1807 = vand.u32 %v152, 4294901760
      %v1808 = vsub.f32 %v152, %v1807
      %v1809 = vand.u32 %v1808, 4294901760
      %1810 = vmatpush1.msra.mxu0 %v1809
      %1811 = vmatprep.subr.mxu0 0.0
      %v1812 = vand.u32 %v153, 4294901760
      %v1813 = vsub.f32 %v153, %v1812
      %v1814 = vand.u32 %v1813, 4294901760
      %1815 = vmatpush1.msra.mxu0 %v1814
      %1816 = vmatprep.subr.mxu0 0.0
      %1817 = vmatpush1.msra.mxu0 0.0
      %1818 = vmatprep.subr.mxu0 0.0
      %1819 = vmatpush1.msra.mxu0 0.0
      %1820 = vmatprep.subr.mxu0 0.0
      %1821 = vmatpush1.msra.mxu0 0.0
      %1822 = vmatprep.subr.mxu0 0.0
      %1823 = vmatpush1.msra.mxu0 0.0
      %1824 = vmatprep.subr.mxu0 0.0
      %1825 = vmatpush1.msra.mxu0 0.0
      %1826 = vmatprep.subr.mxu0 0.0
      %1827 = vmatpush1.msra.mxu0 0.0
      %1828 = vmatprep.subr.mxu0 0.0
      %1829 = vmatpush1.msra.mxu0 0.0
      %1830 = vmatprep.subr.mxu0 0.0
      %1831 = vmatpush1.msra.mxu0 0.0
      %1832 = vmatprep.subr.mxu0 0.0
      %1833 = vmatpush1.msra.mxu0 0.0
      %1834 = vmatprep.subr.mxu0 0.0
      %1835 = vmatpush1.msra.mxu0 0.0
      %1836 = vmatprep.subr.mxu0 0.0
      %1837 = vmatpush1.msra.mxu0 0.0
      %1838 = vmatprep.subr.mxu0 0.0
      %1839 = vmatpush1.msra.mxu0 0.0
      %1840 = vmatprep.subr.mxu0 0.0
      %1841 = vmatpush1.msra.mxu0 0.0
      %1842 = vmatprep.subr.mxu0 0.0
      %1843 = vmatpush1.msra.mxu0 0.0
      %1844 = vmatprep.subr.mxu0 0.0
      %1845 = vmatpush1.msra.mxu0 0.0
      %1846 = vmatprep.subr.mxu0 0.0
      %1847 = vmatpush1.msra.mxu0 0.0
      %1848 = vmatprep.subr.mxu0 0.0
      %1849 = vmatpush1.msra.mxu0 0.0
      %1850 = vmatprep.subr.mxu0 0.0
      %1851 = vmatpush1.msra.mxu0 0.0
      %1852 = vmatprep.subr.mxu0 0.0
      %1853 = vmatpush1.msra.mxu0 0.0
      %1854 = vmatprep.subr.mxu0 0.0
      %1855 = vmatpush1.msra.mxu0 0.0
      %1856 = vmatprep.subr.mxu0 0.0
      %1857 = vmatpush1.msra.mxu0 0.0
      %1858 = vmatprep.subr.mxu0 0.0
      %1859 = vmatpush1.msra.mxu0 0.0
      %1860 = vmatprep.subr.mxu0 0.0
      %1861 = vmatpush1.msra.mxu0 0.0
      %1862 = vmatprep.subr.mxu0 0.0
      %1863 = vmatpush1.msra.mxu0 0.0
      %1864 = vmatprep.mubr.f32.mxu0 0.0
      %v1865 = vand.u32 %v1343, 4294901760
      %1866 = vmatmul.mubr.f32.gmra.mrb[0].mxu0 %v1865
      %v1867 = vpop.f32.mrb[0].mxu0
      %v1868 = vadd.f32 %v1757, %v1867
      %v1869 = vpop.f32.mrb[0].mxu0
      %1870 = vmatprep.mubr.f32.mxu0 0.0
      %v1871 = vand.u32 %v1346, 4294901760
      %1872 = vmatmul.mubr.f32.gmra.mrb[0].mxu0 %v1871
      %v1873 = vpop.f32.mrb[0].mxu0
      %v1874 = vadd.f32 %v1765, %v1873
      %v1875 = vpop.f32.mrb[0].mxu0
      %1876 = vmatprep.mubr.f32.mxu0 0.0
      %v1877 = vand.u32 %v1349, 4294901760
      %1878 = vmatmul.mubr.f32.gmra.mrb[0].mxu0 %v1877
      %v1879 = vpop.f32.mrb[0].mxu0
      %v1880 = vadd.f32 %v1773, %v1879
      %v1881 = vpop.f32.mrb[0].mxu0
      %1882 = vdwg.mxu0
      %1883 = vmatprep.subr.mxu0 0.0
      %v1884 = vand.u32 %v146, 4294901760
      %1885 = vmatpush1.msra.mxu0 %v1884
      %1886 = vmatprep.subr.mxu0 0.0
      %v1887 = vand.u32 %v147, 4294901760
      %1888 = vmatpush1.msra.mxu0 %v1887
      %1889 = vmatprep.subr.mxu0 0.0
      %v1890 = vand.u32 %v148, 4294901760
      %1891 = vmatpush1.msra.mxu0 %v1890
      %1892 = vmatprep.subr.mxu0 0.0
      %v1893 = vand.u32 %v149, 4294901760
      %1894 = vmatpush1.msra.mxu0 %v1893
      %1895 = vmatprep.subr.mxu0 0.0
      %v1896 = vand.u32 %v150, 4294901760
      %1897 = vmatpush1.msra.mxu0 %v1896
      %1898 = vmatprep.subr.mxu0 0.0
      %v1899 = vand.u32 %v151, 4294901760
      %1900 = vmatpush1.msra.mxu0 %v1899
      %1901 = vmatprep.subr.mxu0 0.0
      %v1902 = vand.u32 %v152, 4294901760
      %1903 = vmatpush1.msra.mxu0 %v1902
      %1904 = vmatprep.subr.mxu0 0.0
      %v1905 = vand.u32 %v153, 4294901760
      %1906 = vmatpush1.msra.mxu0 %v1905
      %1907 = vmatprep.subr.mxu0 0.0
      %1908 = vmatpush1.msra.mxu0 0.0
      %1909 = vmatprep.subr.mxu0 0.0
      %1910 = vmatpush1.msra.mxu0 0.0
      %1911 = vmatprep.subr.mxu0 0.0
      %1912 = vmatpush1.msra.mxu0 0.0
      %1913 = vmatprep.subr.mxu0 0.0
      %1914 = vmatpush1.msra.mxu0 0.0
      %1915 = vmatprep.subr.mxu0 0.0
      %1916 = vmatpush1.msra.mxu0 0.0
      %1917 = vmatprep.subr.mxu0 0.0
      %1918 = vmatpush1.msra.mxu0 0.0
      %1919 = vmatprep.subr.mxu0 0.0
      %1920 = vmatpush1.msra.mxu0 0.0
      %1921 = vmatprep.subr.mxu0 0.0
      %1922 = vmatpush1.msra.mxu0 0.0
      %1923 = vmatprep.subr.mxu0 0.0
      %1924 = vmatpush1.msra.mxu0 0.0
      %1925 = vmatprep.subr.mxu0 0.0
      %1926 = vmatpush1.msra.mxu0 0.0
      %1927 = vmatprep.subr.mxu0 0.0
      %1928 = vmatpush1.msra.mxu0 0.0
      %1929 = vmatprep.subr.mxu0 0.0
      %1930 = vmatpush1.msra.mxu0 0.0
      %1931 = vmatprep.subr.mxu0 0.0
      %1932 = vmatpush1.msra.mxu0 0.0
      %1933 = vmatprep.subr.mxu0 0.0
      %1934 = vmatpush1.msra.mxu0 0.0
      %1935 = vmatprep.subr.mxu0 0.0
      %1936 = vmatpush1.msra.mxu0 0.0
      %1937 = vmatprep.subr.mxu0 0.0
      %1938 = vmatpush1.msra.mxu0 0.0
      %1939 = vmatprep.subr.mxu0 0.0
      %1940 = vmatpush1.msra.mxu0 0.0
      %1941 = vmatprep.subr.mxu0 0.0
      %1942 = vmatpush1.msra.mxu0 0.0
      %1943 = vmatprep.subr.mxu0 0.0
      %1944 = vmatpush1.msra.mxu0 0.0
      %1945 = vmatprep.subr.mxu0 0.0
      %1946 = vmatpush1.msra.mxu0 0.0
      %1947 = vmatprep.subr.mxu0 0.0
      %1948 = vmatpush1.msra.mxu0 0.0
      %1949 = vmatprep.subr.mxu0 0.0
      %1950 = vmatpush1.msra.mxu0 0.0
      %1951 = vmatprep.subr.mxu0 0.0
      %1952 = vmatpush1.msra.mxu0 0.0
      %1953 = vmatprep.subr.mxu0 0.0
      %1954 = vmatpush1.msra.mxu0 0.0
      %1955 = vmatprep.mubr.f32.mxu0 0.0
      %v1956 = vand.u32 %v1343, 4294901760
      %1957 = vmatmul.mubr.f32.gmra.mrb[0].mxu0 %v1956
      %v1958 = vpop.f32.mrb[0].mxu0
      %v1959 = vadd.f32 %v1868, %v1958
      %v1960 = vpop.f32.mrb[0].mxu0
      %1961 = vmatprep.mubr.f32.mxu0 0.0
      %v1962 = vand.u32 %v1346, 4294901760
      %1963 = vmatmul.mubr.f32.gmra.mrb[0].mxu0 %v1962
      %v1964 = vpop.f32.mrb[0].mxu0
      %v1965 = vadd.f32 %v1874, %v1964
      %v1966 = vpop.f32.mrb[0].mxu0
      %1967 = vmatprep.mubr.f32.mxu0 0.0
      %v1968 = vand.u32 %v1349, 4294901760
      %1969 = vmatmul.mubr.f32.gmra.mrb[0].mxu0 %v1968
      %v1970 = vpop.f32.mrb[0].mxu0
      %v1971 = vadd.f32 %v1880, %v1970
      %v1972 = vpop.f32.mrb[0].mxu0
      %1973 = vdwg.mxu0
      %v1974 = vmul.f32 %v1959, 0.03125
      %v1975 = vmul.f32 %v1965, 0.03125
      %v1976 = vmul.f32 %v1971, 0.03125
      %v1977 = vadd.f32 %v1974, 1e-05
      %v1978 = vadd.f32 %v1975, 1e-05
      %v1979 = vadd.f32 %v1976, 1e-05
      %v1980 = vrsqrt.pop %v1977
      %v1981 = vrsqrt.pop %v1978
      %v1982 = vrsqrt.pop %v1979
      %v1984 = vsel %vm790, %v1980, 0
      %v1987 = vsel %vm790, %v1981, 0
      %v1990 = vsel %vm790, %v1982, 0
      %1992 = vmatprep.subr.mxu0 0.0
      %v1993 = vand.u32 %v802, 4294901760
      %1994 = vmatpush1.msra.mxu0 %v1993
      %1995 = vmatprep.subr.mxu0 0.0
      %1996 = vmatpush1.msra.mxu0 0.0
      %1997 = vmatprep.subr.mxu0 0.0
      %1998 = vmatpush1.msra.mxu0 0.0
      %1999 = vmatprep.subr.mxu0 0.0
      %2000 = vmatpush1.msra.mxu0 0.0
      %2001 = vmatprep.subr.mxu0 0.0
      %2002 = vmatpush1.msra.mxu0 0.0
      %2003 = vmatprep.subr.mxu0 0.0
      %2004 = vmatpush1.msra.mxu0 0.0
      %2005 = vmatprep.subr.mxu0 0.0
      %2006 = vmatpush1.msra.mxu0 0.0
      %2007 = vmatprep.subr.mxu0 0.0
      %2008 = vmatpush1.msra.mxu0 0.0
      %2009 = vmatprep.subr.mxu0 0.0
      %2010 = vmatpush1.msra.mxu0 0.0
      %2011 = vmatprep.subr.mxu0 0.0
      %2012 = vmatpush1.msra.mxu0 0.0
      %2013 = vmatprep.subr.mxu0 0.0
      %2014 = vmatpush1.msra.mxu0 0.0
      %2015 = vmatprep.subr.mxu0 0.0
      %2016 = vmatpush1.msra.mxu0 0.0
      %2017 = vmatprep.subr.mxu0 0.0
      %2018 = vmatpush1.msra.mxu0 0.0
      %2019 = vmatprep.subr.mxu0 0.0
      %2020 = vmatpush1.msra.mxu0 0.0
      %2021 = vmatprep.subr.mxu0 0.0
      %2022 = vmatpush1.msra.mxu0 0.0
      %2023 = vmatprep.subr.mxu0 0.0
      %2024 = vmatpush1.msra.mxu0 0.0
      %2025 = vmatprep.subr.mxu0 0.0
      %2026 = vmatpush1.msra.mxu0 0.0
      %2027 = vmatprep.subr.mxu0 0.0
      %2028 = vmatpush1.msra.mxu0 0.0
      %2029 = vmatprep.subr.mxu0 0.0
      %2030 = vmatpush1.msra.mxu0 0.0
      %2031 = vmatprep.subr.mxu0 0.0
      %2032 = vmatpush1.msra.mxu0 0.0
      %2033 = vmatprep.subr.mxu0 0.0
      %2034 = vmatpush1.msra.mxu0 0.0
      %2035 = vmatprep.subr.mxu0 0.0
      %2036 = vmatpush1.msra.mxu0 0.0
      %2037 = vmatprep.subr.mxu0 0.0
      %2038 = vmatpush1.msra.mxu0 0.0
      %2039 = vmatprep.subr.mxu0 0.0
      %2040 = vmatpush1.msra.mxu0 0.0
      %2041 = vmatprep.subr.mxu0 0.0
      %2042 = vmatpush1.msra.mxu0 0.0
      %2043 = vmatprep.subr.mxu0 0.0
      %2044 = vmatpush1.msra.mxu0 0.0
      %2045 = vmatprep.subr.mxu0 0.0
      %2046 = vmatpush1.msra.mxu0 0.0
      %2047 = vmatprep.subr.mxu0 0.0
      %2048 = vmatpush1.msra.mxu0 0.0
      %2049 = vmatprep.subr.mxu0 0.0
      %2050 = vmatpush1.msra.mxu0 0.0
      %2051 = vmatprep.subr.mxu0 0.0
      %2052 = vmatpush1.msra.mxu0 0.0
      %2053 = vmatprep.subr.mxu0 0.0
      %2054 = vmatpush1.msra.mxu0 0.0
      %2055 = vmatprep.subr.mxu0 0.0
      %2056 = vmatpush1.msra.mxu0 0.0
      %2057 = vmatprep.mubr.f32.mxu0 0.0
      %v2058 = vand.u32 %v1984, 4294901760
      %v2059 = vsub.f32 %v1984, %v2058
      %v2060 = vand.u32 %v2059, 4294901760
      %v2061 = vsub.f32 %v2059, %v2060
      %v2062 = vand.u32 %v2061, 4294901760
      %2063 = vmatmul.mubr.f32.gmra.mrb[0].mxu0 %v2062
      %v2064 = vpop.f32.mrb[0].mxu0
      %v2065 = vadd.f32 0.0, %v2064
      %v2066 = vpop.f32.mrb[0].mxu0
      %2067 = vmatprep.mubr.f32.mxu0 0.0
      %v2068 = vand.u32 %v1987, 4294901760
      %v2069 = vsub.f32 %v1987, %v2068
      %v2070 = vand.u32 %v2069, 4294901760
      %v2071 = vsub.f32 %v2069, %v2070
      %v2072 = vand.u32 %v2071, 4294901760
      %2073 = vmatmul.mubr.f32.gmra.mrb[0].mxu0 %v2072
      %v2074 = vpop.f32.mrb[0].mxu0
      %v2075 = vadd.f32 0.0, %v2074
      %v2076 = vpop.f32.mrb[0].mxu0
      %2077 = vmatprep.mubr.f32.mxu0 0.0
      %v2078 = vand.u32 %v1990, 4294901760
      %v2079 = vsub.f32 %v1990, %v2078
      %v2080 = vand.u32 %v2079, 4294901760
      %v2081 = vsub.f32 %v2079, %v2080
      %v2082 = vand.u32 %v2081, 4294901760
      %2083 = vmatmul.mubr.f32.gmra.mrb[0].mxu0 %v2082
      %v2084 = vpop.f32.mrb[0].mxu0
      %v2085 = vadd.f32 0.0, %v2084
      %v2086 = vpop.f32.mrb[0].mxu0
      %2087 = vdwg.mxu0
      %2088 = vmatprep.subr.mxu0 0.0
      %v2089 = vand.u32 %v802, 4294901760
      %v2090 = vsub.f32 %v802, %v2089
      %v2091 = vand.u32 %v2090, 4294901760
      %v2092 = vsub.f32 %v2090, %v2091
      %v2093 = vand.u32 %v2092, 4294901760
      %2094 = vmatpush1.msra.mxu0 %v2093
      %2095 = vmatprep.subr.mxu0 0.0
      %2096 = vmatpush1.msra.mxu0 0.0
      %2097 = vmatprep.subr.mxu0 0.0
      %2098 = vmatpush1.msra.mxu0 0.0
      %2099 = vmatprep.subr.mxu0 0.0
      %2100 = vmatpush1.msra.mxu0 0.0
      %2101 = vmatprep.subr.mxu0 0.0
      %2102 = vmatpush1.msra.mxu0 0.0
      %2103 = vmatprep.subr.mxu0 0.0
      %2104 = vmatpush1.msra.mxu0 0.0
      %2105 = vmatprep.subr.mxu0 0.0
      %2106 = vmatpush1.msra.mxu0 0.0
      %2107 = vmatprep.subr.mxu0 0.0
      %2108 = vmatpush1.msra.mxu0 0.0
      %2109 = vmatprep.subr.mxu0 0.0
      %2110 = vmatpush1.msra.mxu0 0.0
      %2111 = vmatprep.subr.mxu0 0.0
      %2112 = vmatpush1.msra.mxu0 0.0
      %2113 = vmatprep.subr.mxu0 0.0
      %2114 = vmatpush1.msra.mxu0 0.0
      %2115 = vmatprep.subr.mxu0 0.0
      %2116 = vmatpush1.msra.mxu0 0.0
      %2117 = vmatprep.subr.mxu0 0.0
      %2118 = vmatpush1.msra.mxu0 0.0
      %2119 = vmatprep.subr.mxu0 0.0
      %2120 = vmatpush1.msra.mxu0 0.0
      %2121 = vmatprep.subr.mxu0 0.0
      %2122 = vmatpush1.msra.mxu0 0.0
      %2123 = vmatprep.subr.mxu0 0.0
      %2124 = vmatpush1.msra.mxu0 0.0
      %2125 = vmatprep.subr.mxu0 0.0
      %2126 = vmatpush1.msra.mxu0 0.0
      %2127 = vmatprep.subr.mxu0 0.0
      %2128 = vmatpush1.msra.mxu0 0.0
      %2129 = vmatprep.subr.mxu0 0.0
      %2130 = vmatpush1.msra.mxu0 0.0
      %2131 = vmatprep.subr.mxu0 0.0
      %2132 = vmatpush1.msra.mxu0 0.0
      %2133 = vmatprep.subr.mxu0 0.0
      %2134 = vmatpush1.msra.mxu0 0.0
      %2135 = vmatprep.subr.mxu0 0.0
      %2136 = vmatpush1.msra.mxu0 0.0
      %2137 = vmatprep.subr.mxu0 0.0
      %2138 = vmatpush1.msra.mxu0 0.0
      %2139 = vmatprep.subr.mxu0 0.0
      %2140 = vmatpush1.msra.mxu0 0.0
      %2141 = vmatprep.subr.mxu0 0.0
      %2142 = vmatpush1.msra.mxu0 0.0
      %2143 = vmatprep.subr.mxu0 0.0
      %2144 = vmatpush1.msra.mxu0 0.0
      %2145 = vmatprep.subr.mxu0 0.0
      %2146 = vmatpush1.msra.mxu0 0.0
      %2147 = vmatprep.subr.mxu0 0.0
      %2148 = vmatpush1.msra.mxu0 0.0
      %2149 = vmatprep.subr.mxu0 0.0
      %2150 = vmatpush1.msra.mxu0 0.0
      %2151 = vmatprep.subr.mxu0 0.0
      %2152 = vmatpush1.msra.mxu0 0.0
      %2153 = vmatprep.subr.mxu0 0.0
      %2154 = vmatpush1.msra.mxu0 0.0
      %2155 = vmatprep.subr.mxu0 0.0
      %2156 = vmatpush1.msra.mxu0 0.0
      %2157 = vmatprep.mubr.f32.mxu0 0.0
      %v2158 = vand.u32 %v1984, 4294901760
      %2159 = vmatmul.mubr.f32.gmra.mrb[0].mxu0 %v2158
      %v2160 = vpop.f32.mrb[0].mxu0
      %v2161 = vadd.f32 %v2065, %v2160
      %v2162 = vpop.f32.mrb[0].mxu0
      %2163 = vmatprep.mubr.f32.mxu0 0.0
      %v2164 = vand.u32 %v1987, 4294901760
      %2165 = vmatmul.mubr.f32.gmra.mrb[0].mxu0 %v2164
      %v2166 = vpop.f32.mrb[0].mxu0
      %v2167 = vadd.f32 %v2075, %v2166
      %v2168 = vpop.f32.mrb[0].mxu0
      %2169 = vmatprep.mubr.f32.mxu0 0.0
      %v2170 = vand.u32 %v1990, 4294901760
      %2171 = vmatmul.mubr.f32.gmra.mrb[0].mxu0 %v2170
      %v2172 = vpop.f32.mrb[0].mxu0
      %v2173 = vadd.f32 %v2085, %v2172
      %v2174 = vpop.f32.mrb[0].mxu0
      %2175 = vdwg.mxu0
      %2176 = vmatprep.subr.mxu0 0.0
      %v2177 = vand.u32 %v802, 4294901760
      %v2178 = vsub.f32 %v802, %v2177
      %2179 = vmatpush1.msra.mxu0 %v2178
      %2180 = vmatprep.subr.mxu0 0.0
      %2181 = vmatpush1.msra.mxu0 0.0
      %2182 = vmatprep.subr.mxu0 0.0
      %2183 = vmatpush1.msra.mxu0 0.0
      %2184 = vmatprep.subr.mxu0 0.0
      %2185 = vmatpush1.msra.mxu0 0.0
      %2186 = vmatprep.subr.mxu0 0.0
      %2187 = vmatpush1.msra.mxu0 0.0
      %2188 = vmatprep.subr.mxu0 0.0
      %2189 = vmatpush1.msra.mxu0 0.0
      %2190 = vmatprep.subr.mxu0 0.0
      %2191 = vmatpush1.msra.mxu0 0.0
      %2192 = vmatprep.subr.mxu0 0.0
      %2193 = vmatpush1.msra.mxu0 0.0
      %2194 = vmatprep.subr.mxu0 0.0
      %2195 = vmatpush1.msra.mxu0 0.0
      %2196 = vmatprep.subr.mxu0 0.0
      %2197 = vmatpush1.msra.mxu0 0.0
      %2198 = vmatprep.subr.mxu0 0.0
      %2199 = vmatpush1.msra.mxu0 0.0
      %2200 = vmatprep.subr.mxu0 0.0
      %2201 = vmatpush1.msra.mxu0 0.0
      %2202 = vmatprep.subr.mxu0 0.0
      %2203 = vmatpush1.msra.mxu0 0.0
      %2204 = vmatprep.subr.mxu0 0.0
      %2205 = vmatpush1.msra.mxu0 0.0
      %2206 = vmatprep.subr.mxu0 0.0
      %2207 = vmatpush1.msra.mxu0 0.0
      %2208 = vmatprep.subr.mxu0 0.0
      %2209 = vmatpush1.msra.mxu0 0.0
      %2210 = vmatprep.subr.mxu0 0.0
      %2211 = vmatpush1.msra.mxu0 0.0
      %2212 = vmatprep.subr.mxu0 0.0
      %2213 = vmatpush1.msra.mxu0 0.0
      %2214 = vmatprep.subr.mxu0 0.0
      %2215 = vmatpush1.msra.mxu0 0.0
      %2216 = vmatprep.subr.mxu0 0.0
      %2217 = vmatpush1.msra.mxu0 0.0
      %2218 = vmatprep.subr.mxu0 0.0
      %2219 = vmatpush1.msra.mxu0 0.0
      %2220 = vmatprep.subr.mxu0 0.0
      %2221 = vmatpush1.msra.mxu0 0.0
      %2222 = vmatprep.subr.mxu0 0.0
      %2223 = vmatpush1.msra.mxu0 0.0
      %2224 = vmatprep.subr.mxu0 0.0
      %2225 = vmatpush1.msra.mxu0 0.0
      %2226 = vmatprep.subr.mxu0 0.0
      %2227 = vmatpush1.msra.mxu0 0.0
      %2228 = vmatprep.subr.mxu0 0.0
      %2229 = vmatpush1.msra.mxu0 0.0
      %2230 = vmatprep.subr.mxu0 0.0
      %2231 = vmatpush1.msra.mxu0 0.0
      %2232 = vmatprep.subr.mxu0 0.0
      %2233 = vmatpush1.msra.mxu0 0.0
      %2234 = vmatprep.subr.mxu0 0.0
      %2235 = vmatpush1.msra.mxu0 0.0
      %2236 = vmatprep.subr.mxu0 0.0
      %2237 = vmatpush1.msra.mxu0 0.0
      %2238 = vmatprep.subr.mxu0 0.0
      %2239 = vmatpush1.msra.mxu0 0.0
      %2240 = vmatprep.subr.mxu0 0.0
      %2241 = vmatpush1.msra.mxu0 0.0
      %2242 = vmatprep.mubr.f32.mxu0 0.0
      %v2243 = vand.u32 %v1984, 4294901760
      %v2244 = vsub.f32 %v1984, %v2243
      %2245 = vmatmul.mubr.f32.gmra.mrb[0].mxu0 %v2244
      %v2246 = vpop.f32.mrb[0].mxu0
      %v2247 = vadd.f32 %v2161, %v2246
      %v2248 = vpop.f32.mrb[0].mxu0
      %2249 = vmatprep.mubr.f32.mxu0 0.0
      %v2250 = vand.u32 %v1987, 4294901760
      %v2251 = vsub.f32 %v1987, %v2250
      %2252 = vmatmul.mubr.f32.gmra.mrb[0].mxu0 %v2251
      %v2253 = vpop.f32.mrb[0].mxu0
      %v2254 = vadd.f32 %v2167, %v2253
      %v2255 = vpop.f32.mrb[0].mxu0
      %2256 = vmatprep.mubr.f32.mxu0 0.0
      %v2257 = vand.u32 %v1990, 4294901760
      %v2258 = vsub.f32 %v1990, %v2257
      %2259 = vmatmul.mubr.f32.gmra.mrb[0].mxu0 %v2258
      %v2260 = vpop.f32.mrb[0].mxu0
      %v2261 = vadd.f32 %v2173, %v2260
      %v2262 = vpop.f32.mrb[0].mxu0
      %2263 = vdwg.mxu0
      %2264 = vmatprep.subr.mxu0 0.0
      %v2265 = vand.u32 %v802, 4294901760
      %2266 = vmatpush1.msra.mxu0 %v2265
      %2267 = vmatprep.subr.mxu0 0.0
      %2268 = vmatpush1.msra.mxu0 0.0
      %2269 = vmatprep.subr.mxu0 0.0
      %2270 = vmatpush1.msra.mxu0 0.0
      %2271 = vmatprep.subr.mxu0 0.0
      %2272 = vmatpush1.msra.mxu0 0.0
      %2273 = vmatprep.subr.mxu0 0.0
      %2274 = vmatpush1.msra.mxu0 0.0
      %2275 = vmatprep.subr.mxu0 0.0
      %2276 = vmatpush1.msra.mxu0 0.0
      %2277 = vmatprep.subr.mxu0 0.0
      %2278 = vmatpush1.msra.mxu0 0.0
      %2279 = vmatprep.subr.mxu0 0.0
      %2280 = vmatpush1.msra.mxu0 0.0
      %2281 = vmatprep.subr.mxu0 0.0
      %2282 = vmatpush1.msra.mxu0 0.0
      %2283 = vmatprep.subr.mxu0 0.0
      %2284 = vmatpush1.msra.mxu0 0.0
      %2285 = vmatprep.subr.mxu0 0.0
      %2286 = vmatpush1.msra.mxu0 0.0
      %2287 = vmatprep.subr.mxu0 0.0
      %2288 = vmatpush1.msra.mxu0 0.0
      %2289 = vmatprep.subr.mxu0 0.0
      %2290 = vmatpush1.msra.mxu0 0.0
      %2291 = vmatprep.subr.mxu0 0.0
      %2292 = vmatpush1.msra.mxu0 0.0
      %2293 = vmatprep.subr.mxu0 0.0
      %2294 = vmatpush1.msra.mxu0 0.0
      %2295 = vmatprep.subr.mxu0 0.0
      %2296 = vmatpush1.msra.mxu0 0.0
      %2297 = vmatprep.subr.mxu0 0.0
      %2298 = vmatpush1.msra.mxu0 0.0
      %2299 = vmatprep.subr.mxu0 0.0
      %2300 = vmatpush1.msra.mxu0 0.0
      %2301 = vmatprep.subr.mxu0 0.0
      %2302 = vmatpush1.msra.mxu0 0.0
      %2303 = vmatprep.subr.mxu0 0.0
      %2304 = vmatpush1.msra.mxu0 0.0
      %2305 = vmatprep.subr.mxu0 0.0
      %2306 = vmatpush1.msra.mxu0 0.0
      %2307 = vmatprep.subr.mxu0 0.0
      %2308 = vmatpush1.msra.mxu0 0.0
      %2309 = vmatprep.subr.mxu0 0.0
      %2310 = vmatpush1.msra.mxu0 0.0
      %2311 = vmatprep.subr.mxu0 0.0
      %2312 = vmatpush1.msra.mxu0 0.0
      %2313 = vmatprep.subr.mxu0 0.0
      %2314 = vmatpush1.msra.mxu0 0.0
      %2315 = vmatprep.subr.mxu0 0.0
      %2316 = vmatpush1.msra.mxu0 0.0
      %2317 = vmatprep.subr.mxu0 0.0
      %2318 = vmatpush1.msra.mxu0 0.0
      %2319 = vmatprep.subr.mxu0 0.0
      %2320 = vmatpush1.msra.mxu0 0.0
      %2321 = vmatprep.subr.mxu0 0.0
      %2322 = vmatpush1.msra.mxu0 0.0
      %2323 = vmatprep.subr.mxu0 0.0
      %2324 = vmatpush1.msra.mxu0 0.0
      %2325 = vmatprep.subr.mxu0 0.0
      %2326 = vmatpush1.msra.mxu0 0.0
      %2327 = vmatprep.subr.mxu0 0.0
      %2328 = vmatpush1.msra.mxu0 0.0
      %2329 = vmatprep.mubr.f32.mxu0 0.0
      %v2330 = vand.u32 %v1984, 4294901760
      %v2331 = vsub.f32 %v1984, %v2330
      %v2332 = vand.u32 %v2331, 4294901760
      %2333 = vmatmul.mubr.f32.gmra.mrb[0].mxu0 %v2332
      %v2334 = vpop.f32.mrb[0].mxu0
      %v2335 = vadd.f32 %v2247, %v2334
      %v2336 = vpop.f32.mrb[0].mxu0
      %2337 = vmatprep.mubr.f32.mxu0 0.0
      %v2338 = vand.u32 %v1987, 4294901760
      %v2339 = vsub.f32 %v1987, %v2338
      %v2340 = vand.u32 %v2339, 4294901760
      %2341 = vmatmul.mubr.f32.gmra.mrb[0].mxu0 %v2340
      %v2342 = vpop.f32.mrb[0].mxu0
      %v2343 = vadd.f32 %v2254, %v2342
      %v2344 = vpop.f32.mrb[0].mxu0
      %2345 = vmatprep.mubr.f32.mxu0 0.0
      %v2346 = vand.u32 %v1990, 4294901760
      %v2347 = vsub.f32 %v1990, %v2346
      %v2348 = vand.u32 %v2347, 4294901760
      %2349 = vmatmul.mubr.f32.gmra.mrb[0].mxu0 %v2348
      %v2350 = vpop.f32.mrb[0].mxu0
      %v2351 = vadd.f32 %v2261, %v2350
      %v2352 = vpop.f32.mrb[0].mxu0
      %2353 = vdwg.mxu0
      %2354 = vmatprep.subr.mxu0 0.0
      %v2355 = vand.u32 %v802, 4294901760
      %v2356 = vsub.f32 %v802, %v2355
      %v2357 = vand.u32 %v2356, 4294901760
      %2358 = vmatpush1.msra.mxu0 %v2357
      %2359 = vmatprep.subr.mxu0 0.0
      %2360 = vmatpush1.msra.mxu0 0.0
      %2361 = vmatprep.subr.mxu0 0.0
      %2362 = vmatpush1.msra.mxu0 0.0
      %2363 = vmatprep.subr.mxu0 0.0
      %2364 = vmatpush1.msra.mxu0 0.0
      %2365 = vmatprep.subr.mxu0 0.0
      %2366 = vmatpush1.msra.mxu0 0.0
      %2367 = vmatprep.subr.mxu0 0.0
      %2368 = vmatpush1.msra.mxu0 0.0
      %2369 = vmatprep.subr.mxu0 0.0
      %2370 = vmatpush1.msra.mxu0 0.0
      %2371 = vmatprep.subr.mxu0 0.0
      %2372 = vmatpush1.msra.mxu0 0.0
      %2373 = vmatprep.subr.mxu0 0.0
      %2374 = vmatpush1.msra.mxu0 0.0
      %2375 = vmatprep.subr.mxu0 0.0
      %2376 = vmatpush1.msra.mxu0 0.0
      %2377 = vmatprep.subr.mxu0 0.0
      %2378 = vmatpush1.msra.mxu0 0.0
      %2379 = vmatprep.subr.mxu0 0.0
      %2380 = vmatpush1.msra.mxu0 0.0
      %2381 = vmatprep.subr.mxu0 0.0
      %2382 = vmatpush1.msra.mxu0 0.0
      %2383 = vmatprep.subr.mxu0 0.0
      %2384 = vmatpush1.msra.mxu0 0.0
      %2385 = vmatprep.subr.mxu0 0.0
      %2386 = vmatpush1.msra.mxu0 0.0
      %2387 = vmatprep.subr.mxu0 0.0
      %2388 = vmatpush1.msra.mxu0 0.0
      %2389 = vmatprep.subr.mxu0 0.0
      %2390 = vmatpush1.msra.mxu0 0.0
      %2391 = vmatprep.subr.mxu0 0.0
      %2392 = vmatpush1.msra.mxu0 0.0
      %2393 = vmatprep.subr.mxu0 0.0
      %2394 = vmatpush1.msra.mxu0 0.0
      %2395 = vmatprep.subr.mxu0 0.0
      %2396 = vmatpush1.msra.mxu0 0.0
      %2397 = vmatprep.subr.mxu0 0.0
      %2398 = vmatpush1.msra.mxu0 0.0
      %2399 = vmatprep.subr.mxu0 0.0
      %2400 = vmatpush1.msra.mxu0 0.0
      %2401 = vmatprep.subr.mxu0 0.0
      %2402 = vmatpush1.msra.mxu0 0.0
      %2403 = vmatprep.subr.mxu0 0.0
      %2404 = vmatpush1.msra.mxu0 0.0
      %2405 = vmatprep.subr.mxu0 0.0
      %2406 = vmatpush1.msra.mxu0 0.0
      %2407 = vmatprep.subr.mxu0 0.0
      %2408 = vmatpush1.msra.mxu0 0.0
      %2409 = vmatprep.subr.mxu0 0.0
      %2410 = vmatpush1.msra.mxu0 0.0
      %2411 = vmatprep.subr.mxu0 0.0
      %2412 = vmatpush1.msra.mxu0 0.0
      %2413 = vmatprep.subr.mxu0 0.0
      %2414 = vmatpush1.msra.mxu0 0.0
      %2415 = vmatprep.subr.mxu0 0.0
      %2416 = vmatpush1.msra.mxu0 0.0
      %2417 = vmatprep.subr.mxu0 0.0
      %2418 = vmatpush1.msra.mxu0 0.0
      %2419 = vmatprep.subr.mxu0 0.0
      %2420 = vmatpush1.msra.mxu0 0.0
      %2421 = vmatprep.mubr.f32.mxu0 0.0
      %v2422 = vand.u32 %v1984, 4294901760
      %2423 = vmatmul.mubr.f32.gmra.mrb[0].mxu0 %v2422
      %v2424 = vpop.f32.mrb[0].mxu0
      %v2425 = vadd.f32 %v2335, %v2424
      %v2426 = vpop.f32.mrb[0].mxu0
      %2427 = vmatprep.mubr.f32.mxu0 0.0
      %v2428 = vand.u32 %v1987, 4294901760
      %2429 = vmatmul.mubr.f32.gmra.mrb[0].mxu0 %v2428
      %v2430 = vpop.f32.mrb[0].mxu0
      %v2431 = vadd.f32 %v2343, %v2430
      %v2432 = vpop.f32.mrb[0].mxu0
      %2433 = vmatprep.mubr.f32.mxu0 0.0
      %v2434 = vand.u32 %v1990, 4294901760
      %2435 = vmatmul.mubr.f32.gmra.mrb[0].mxu0 %v2434
      %v2436 = vpop.f32.mrb[0].mxu0
      %v2437 = vadd.f32 %v2351, %v2436
      %v2438 = vpop.f32.mrb[0].mxu0
      %2439 = vdwg.mxu0
      %2440 = vmatprep.subr.mxu0 0.0
      %v2441 = vand.u32 %v802, 4294901760
      %2442 = vmatpush1.msra.mxu0 %v2441
      %2443 = vmatprep.subr.mxu0 0.0
      %2444 = vmatpush1.msra.mxu0 0.0
      %2445 = vmatprep.subr.mxu0 0.0
      %2446 = vmatpush1.msra.mxu0 0.0
      %2447 = vmatprep.subr.mxu0 0.0
      %2448 = vmatpush1.msra.mxu0 0.0
      %2449 = vmatprep.subr.mxu0 0.0
      %2450 = vmatpush1.msra.mxu0 0.0
      %2451 = vmatprep.subr.mxu0 0.0
      %2452 = vmatpush1.msra.mxu0 0.0
      %2453 = vmatprep.subr.mxu0 0.0
      %2454 = vmatpush1.msra.mxu0 0.0
      %2455 = vmatprep.subr.mxu0 0.0
      %2456 = vmatpush1.msra.mxu0 0.0
      %2457 = vmatprep.subr.mxu0 0.0
      %2458 = vmatpush1.msra.mxu0 0.0
      %2459 = vmatprep.subr.mxu0 0.0
      %2460 = vmatpush1.msra.mxu0 0.0
      %2461 = vmatprep.subr.mxu0 0.0
      %2462 = vmatpush1.msra.mxu0 0.0
      %2463 = vmatprep.subr.mxu0 0.0
      %2464 = vmatpush1.msra.mxu0 0.0
      %2465 = vmatprep.subr.mxu0 0.0
      %2466 = vmatpush1.msra.mxu0 0.0
      %2467 = vmatprep.subr.mxu0 0.0
      %2468 = vmatpush1.msra.mxu0 0.0
      %2469 = vmatprep.subr.mxu0 0.0
      %2470 = vmatpush1.msra.mxu0 0.0
      %2471 = vmatprep.subr.mxu0 0.0
      %2472 = vmatpush1.msra.mxu0 0.0
      %2473 = vmatprep.subr.mxu0 0.0
      %2474 = vmatpush1.msra.mxu0 0.0
      %2475 = vmatprep.subr.mxu0 0.0
      %2476 = vmatpush1.msra.mxu0 0.0
      %2477 = vmatprep.subr.mxu0 0.0
      %2478 = vmatpush1.msra.mxu0 0.0
      %2479 = vmatprep.subr.mxu0 0.0
      %2480 = vmatpush1.msra.mxu0 0.0
      %2481 = vmatprep.subr.mxu0 0.0
      %2482 = vmatpush1.msra.mxu0 0.0
      %2483 = vmatprep.subr.mxu0 0.0
      %2484 = vmatpush1.msra.mxu0 0.0
      %2485 = vmatprep.subr.mxu0 0.0
      %2486 = vmatpush1.msra.mxu0 0.0
      %2487 = vmatprep.subr.mxu0 0.0
      %2488 = vmatpush1.msra.mxu0 0.0
      %2489 = vmatprep.subr.mxu0 0.0
      %2490 = vmatpush1.msra.mxu0 0.0
      %2491 = vmatprep.subr.mxu0 0.0
      %2492 = vmatpush1.msra.mxu0 0.0
      %2493 = vmatprep.subr.mxu0 0.0
      %2494 = vmatpush1.msra.mxu0 0.0
      %2495 = vmatprep.subr.mxu0 0.0
      %2496 = vmatpush1.msra.mxu0 0.0
      %2497 = vmatprep.subr.mxu0 0.0
      %2498 = vmatpush1.msra.mxu0 0.0
      %2499 = vmatprep.subr.mxu0 0.0
      %2500 = vmatpush1.msra.mxu0 0.0
      %2501 = vmatprep.subr.mxu0 0.0
      %2502 = vmatpush1.msra.mxu0 0.0
      %2503 = vmatprep.subr.mxu0 0.0
      %2504 = vmatpush1.msra.mxu0 0.0
      %2505 = vmatprep.mubr.f32.mxu0 0.0
      %v2506 = vand.u32 %v1984, 4294901760
      %2507 = vmatmul.mubr.f32.gmra.mrb[0].mxu0 %v2506
      %v2508 = vpop.f32.mrb[0].mxu0
      %v2509 = vadd.f32 %v2425, %v2508
      %v2510 = vpop.f32.mrb[0].mxu0
      %2511 = vmatprep.mubr.f32.mxu0 0.0
      %v2512 = vand.u32 %v1987, 4294901760
      %2513 = vmatmul.mubr.f32.gmra.mrb[0].mxu0 %v2512
      %v2514 = vpop.f32.mrb[0].mxu0
      %v2515 = vadd.f32 %v2431, %v2514
      %v2516 = vpop.f32.mrb[0].mxu0
      %2517 = vmatprep.mubr.f32.mxu0 0.0
      %v2518 = vand.u32 %v1990, 4294901760
      %2519 = vmatmul.mubr.f32.gmra.mrb[0].mxu0 %v2518
      %v2520 = vpop.f32.mrb[0].mxu0
      %v2521 = vadd.f32 %v2437, %v2520
      %v2522 = vpop.f32.mrb[0].mxu0
      %2523 = vdwg.mxu0
      %v2524 = vmul.f32 %v1336, %v2509
      %v2525 = vmul.f32 %v1337, %v2515
      %v2526 = vmul.f32 %v1338, %v2521
      %v2528 = vlaneseq
      %v2529 = vshrl.u32 %v2528, 7
      %v2530 = vsub.s32 0, %v2529
      %v2531 = vrot.slane %v144, %v2530
      %v2533 = vmul.f32 %v2524, %v2531
      %v2534 = vmul.f32 %v2525, %v2531
      %v2535 = vmul.f32 %v2526, %v2531
      %v2537 = vlaneseq
      %v2538 = vshrl.u32 %v2537, 7
      %v2539 = vsub.s32 0, %v2538
      %v2540 = vrot.slane %v145, %v2539
      %v2542 = vadd.f32 %v2533, %v2540
      %v2543 = vadd.f32 %v2534, %v2540
      %v2544 = vadd.f32 %v2535, %v2540
      %2545 = vst.msk [vmem:[#allocation3] sm:$0xff] %vm134, %v2542
      %2546 = vst.msk [vmem:[#allocation3 + $0x8] sm:$0xff] %vm134, %v2543
      %2547 = vst.msk [vmem:[#allocation3 + $0x10] sm:$0xff] %vm134, %v2544
    $region33: #{tpu_custom_call.1} parent=1 // pred_fallthru
      _
    // Predicated region
    $region34: #{tpu_custom_call.1} parent=1 // pred_check
      _
    $region35: #{tpu_custom_call.1} parent=1 // pred_check_branch
      %2549 = sbr.rel (0) target = $region37
    $region36: #{tpu_custom_call.1} parent=1 // pred_region
      %s2551 = ssub.s32 384, 384
      %2552 = vsyncadd [#allocation4], %s2551
      %s2553 = sshll.u32 [#allocation3], 4
      %s2554 = int_to_ptr.vmem [resolvable:$true] %s2553
      %2559 = dma.vmem_to_hbm [thread:$0]  %s2554, 384, %s6, [#allocation4], 128, 128, 8
    $region37: #{tpu_custom_call.1} parent=1 // pred_fallthru
      _
    // Predicated region
    $region38: #{tpu_custom_call.1} parent=1 // pred_check
      _
    $region39: #{tpu_custom_call.1} parent=1 // pred_check_branch
      %2561 = sbr.rel (0) target = $region41
    $region40: #{tpu_custom_call.1} parent=1 // pred_region
      %2562 = dma.done [#allocation4], 384
    $region41: #{tpu_custom_call.1} parent=1 // pred_fallthru
      _
    %2563 = vsyncpa [#allocation4], 1

</llo_original>
